<compile_context>
chip_gen: v6e
topology: v6e:2x2x1
jax: 0.10.0
libtpu: 0.0.40
codegen_flags: <defaults>
</compile_context>

<pallas_src>
import jax
import jax.numpy as jnp
from jax import lax
from jax.experimental import pallas as pl
from jax.experimental.pallas import tpu as pltpu


_VMEM_LIMIT = 32 * 1024 * 1024          # scoped VMEM limit, safe on v5e/v6e/v7x
_FUSED_VMEM_BUDGET = 20 * 1024 * 1024   # budget for single-block fused kernels


def _round_up(x, m):
    return ((x + m - 1) // m) * m


def _cdiv(a, b):
    return -(-a // b)


def _num_tensorcores():
    """2 on v7x (2 TensorCores/chip), else 1 (v5e/v6e)."""
    try:
        d = jax.devices()[0]
        if d.platform == "tpu":
            kind = d.device_kind.lower()
            if "v7" in kind or "7x" in kind:
                return 2
    except Exception:
        pass
    return 1


def _fused_bytes(Mp, Kp, Np):
    # A (bf16) + W (bf16) + intermediate/out (f32, x2 headroom).
    return Mp * Kp * 2 + Kp * Np * 2 + 2 * Mp * Np * 4


# -----------------------------------------------------------------------------
# Fused Pallas kernels (primary path)
# -----------------------------------------------------------------------------
def _make_conv_bn_relu_kernel(m_true, eps):
    """conv-GEMM + BatchNorm(batch stats) + ReLU in a single kernel.

    A is zero-padded to Mp rows / Kp cols and W to Np cols; the zero rows and
    columns contribute nothing to the column sums, so batch statistics are
    computed with the *true* row count m_true (a compile-time constant).
    """
    inv_m = 1.0 / float(m_true)

    def kernel(a_ref, w_ref, g_ref, b_ref, o_ref):
        y = jnp.dot(a_ref[...], w_ref[...], preferred_element_type=jnp.float32)
        s = jnp.sum(y, axis=0, keepdims=True)
        ss = jnp.sum(y * y, axis=0, keepdims=True)
        mean = s * inv_m
        var = jnp.maximum(ss * inv_m - mean * mean, 0.0)   # biased, like PyTorch
        scale = g_ref[...] * lax.rsqrt(var + eps)
        shift = b_ref[...] - mean * scale
        o_ref[...] = jnp.maximum(y * scale + shift, 0.0)

    return kernel


def _make_conv_bn_relu_fc_sigmoid_kernel(m_true, eps):
    """Layer-3 tail fully fused: conv-GEMM + BN + ReLU + Linear(->1) + sigmoid."""
    inv_m = 1.0 / float(m_true)

    def kernel(a_ref, w_ref, g_ref, b_ref, wfc_ref, bfc_ref, o_ref):
        y = jnp.dot(a_ref[...], w_ref[...], preferred_element_type=jnp.float32)
        s = jnp.sum(y, axis=0, keepdims=True)
        ss = jnp.sum(y * y, axis=0, keepdims=True)
        mean = s * inv_m
        var = jnp.maximum(ss * inv_m - mean * mean, 0.0)
        scale = g_ref[...] * lax.rsqrt(var + eps)
        shift = b_ref[...] - mean * scale
        h = jnp.maximum(y * scale + shift, 0.0)
        z = jnp.dot(h, wfc_ref[...], preferred_element_type=jnp.float32) + bfc_ref[...]
        o_ref[...] = 1.0 / (1.0 + jnp.exp(-z))

    return kernel


def _fc_sigmoid_kernel(h_ref, w_ref, b_ref, o_ref):
    z = jnp.dot(h_ref[...], w_ref[...], preferred_element_type=jnp.float32) + b_ref[...]
    o_ref[...] = 1.0 / (1.0 + jnp.exp(-z))


# -----------------------------------------------------------------------------
# Fallback Pallas kernels (only used when a layer does not fit one VMEM block)
# -----------------------------------------------------------------------------
def _gemm_single_kernel(a_ref, b_ref, o_ref):
    o_ref[...] = jnp.dot(a_ref[...], b_ref[...], preferred_element_type=jnp.float32)


def _gemm_acc_kernel(a_ref, b_ref, o_ref, acc_ref):
    k = pl.program_id(2)

    @pl.when(k == 0)
    def _():
        acc_ref[...] = jnp.zeros_like(acc_ref)

    acc_ref[...] += jnp.dot(a_ref[...], b_ref[...], preferred_element_type=jnp.float32)

    @pl.when(k == pl.num_programs(2) - 1)
    def _():
        o_ref[...] = acc_ref[...]


def _bn_relu_kernel(x_ref, s_ref, sh_ref, o_ref):
    o_ref[...] = jnp.maximum(x_ref[...] * s_ref[...] + sh_ref[...], 0.0)


def _choose_m_tiling(M, tm_cap=512, want_parallel=False):
    """(Mp, tm): tm <= ~tm_cap, tm % 8 == 0 (128-multiple when possible).

    The M split is only forced (>=2 tiles) when `want_parallel` — i.e. on a
    2-TensorCore part (v7x); on v5e/v6e it would just duplicate the weight
    stream.
    """
    Mp0 = _round_up(M, 8)
    n_min = 2 if want_parallel else 1
    if Mp0 <= tm_cap and n_min == 1:
        return Mp0, Mp0
    n_m = max(n_min, _cdiv(Mp0, tm_cap))
    unit = 128 if Mp0 >= 128 * n_m else 8
    tm = _round_up(_cdiv(Mp0, n_m), unit)
    return tm * n_m, tm


def _gemm_tiled(a_p, ws, tm):
    """Tiled GEMM fallback. a_p: (Mp, Kp) bf16 padded. Returns (Mp, Np) f32."""
    Mp, Kp = a_p.shape
    Np, tk, tn = ws["Np"], ws["tk"], ws["tn"]
    n_m, n_n, n_k = Mp // tm, Np // tn, Kp // tk
    if n_k == 1:
        return pl.pallas_call(
            _gemm_single_kernel,
            out_shape=jax.ShapeDtypeStruct((Mp, Np), jnp.float32),
            grid_spec=pltpu.PrefetchScalarGridSpec(
                num_scalar_prefetch=0, grid=(n_m, n_n),
                in_specs=[pl.BlockSpec((tm, tk), lambda i, j: (i, 0)),
                          pl.BlockSpec((tk, tn), lambda i, j: (0, j))],
                out_specs=pl.BlockSpec((tm, tn), lambda i, j: (i, j))),
            compiler_params=pltpu.CompilerParams(
                dimension_semantics=("parallel", "parallel"),
                vmem_limit_bytes=_VMEM_LIMIT),
        )(a_p, ws["w"])
    return pl.pallas_call(
        _gemm_acc_kernel,
        out_shape=jax.ShapeDtypeStruct((Mp, Np), jnp.float32),
        grid_spec=pltpu.PrefetchScalarGridSpec(
            num_scalar_prefetch=0, grid=(n_m, n_n, n_k),
            in_specs=[pl.BlockSpec((tm, tk), lambda i, j, k: (i, k)),
                      pl.BlockSpec((tk, tn), lambda i, j, k: (k, j))],
            out_specs=pl.BlockSpec((tm, tn), lambda i, j, k: (i, j)),
            scratch_shapes=[pltpu.VMEM((tm, tn), jnp.float32)]),
        compiler_params=pltpu.CompilerParams(
            dimension_semantics=("parallel", "parallel", "arbitrary"),
            vmem_limit_bytes=_VMEM_LIMIT),
    )(a_p, ws["w"])


def _bn_relu_tiled(y, scale, shift):
    """Fallback elementwise BN-affine + ReLU, gridded over row blocks."""
    M, C = y.shape
    Cp = _round_up(C, 128)
    tm = min(_round_up(M, 8), 1024)
    Mp = _round_up(M, tm)
    y_p = jnp.pad(y, ((0, Mp - M), (0, Cp - C)))
    s_p = jnp.pad(scale, (0, Cp - C)).reshape(1, Cp)
    sh_p = jnp.pad(shift, (0, Cp - C)).reshape(1, Cp)
    out = pl.pallas_call(
        _bn_relu_kernel,
        out_shape=jax.ShapeDtypeStruct((Mp, Cp), jnp.float32),
        grid_spec=pltpu.PrefetchScalarGridSpec(
            num_scalar_prefetch=0, grid=(Mp // tm,),
            in_specs=[pl.BlockSpec((tm, Cp), lambda i: (i, 0)),
                      pl.BlockSpec((1, Cp), lambda i: (0, 0)),
                      pl.BlockSpec((1, Cp), lambda i: (0, 0))],
            out_specs=pl.BlockSpec((tm, Cp), lambda i: (i, 0))),
        compiler_params=pltpu.CompilerParams(
            dimension_semantics=("parallel",), vmem_limit_bytes=_VMEM_LIMIT),
    )(y_p, s_p, sh_p)
    return out[:M, :C]


# -----------------------------------------------------------------------------
# im2col for Conv3d(k=5, stride=2, pad=1), channels-last, bf16 output
# -----------------------------------------------------------------------------
def im2col_3d_cl(x, k=5, stride=2, pad=1, out_dtype=jnp.bfloat16):
    """x: (B, D, H, W, C) -> (B*Do*Ho*Wo, k^3*C) in out_dtype; cols (kd,kh,kw,C)."""
    B, D, H, W, C = x.shape
    Do = (D + 2 * pad - k) // stride + 1
    Ho = (H + 2 * pad - k) // stride + 1
    Wo = (W + 2 * pad - k) // stride + 1
    xp = jnp.pad(x.astype(out_dtype),
                 ((0, 0), (pad, pad), (pad, pad), (pad, pad), (0, 0)))
    if Do == Ho == Wo == 1 and (D + 2 * pad, H + 2 * pad, W + 2 * pad) == (k, k, k):
        # Exactly one patch per sample (layer 3 for a 16^3 input): the im2col
        # matrix is just the padded volume reshaped -- no 125-slice stack.
        return xp.reshape(B, k ** 3 * C), (B, Do, Ho, Wo)
    cols = []
    for kd in range(k):
        for kh in range(k):
            for kw in range(k):
                cols.append(xp[:,
                               kd:kd + stride * (Do - 1) + 1:stride,
                               kh:kh + stride * (Ho - 1) + 1:stride,
                               kw:kw + stride * (Wo - 1) + 1:stride, :])
    patches = jnp.stack(cols, axis=4)                  # (B, Do, Ho, Wo, k^3, C)
    return patches.reshape(B * Do * Ho * Wo, k ** 3 * C), (B, Do, Ho, Wo)


# -----------------------------------------------------------------------------
# Parameters (PyTorch-style init) and one-time baking for the Pallas path
# -----------------------------------------------------------------------------
def init_params(key, fc_in=256):
    def uconv(key, cout, cin, k):
        fan_in = cin * k ** 3
        bound = 1.0 / jnp.sqrt(fan_in)
        kw_, kb_ = jax.random.split(key)
        w = jax.random.uniform(kw_, (cout, cin, k, k, k), jnp.float32, -bound, bound)
        b = jax.random.uniform(kb_, (cout,), jnp.float32, -bound, bound)
        return w, b

    k1, k2, k3, k4 = jax.random.split(key, 4)
    p = {}
    p["w1"], p["b1"] = uconv(k1, 64, 1, 5)
    p["w2"], p["b2"] = uconv(k2, 128, 64, 5)
    p["w3"], p["b3"] = uconv(k3, 256, 128, 5)
    for i, c in zip((1, 2, 3), (64, 128, 256)):
        p[f"g{i}"] = jnp.ones((c,), jnp.float32)
        p[f"be{i}"] = jnp.zeros((c,), jnp.float32)
    bound = 1.0 / jnp.sqrt(float(fc_in))
    kfw, kfb = jax.random.split(k4)
    p["wfc"] = jax.random.uniform(kfw, (1, fc_in), jnp.float32, -bound, bound)
    p["bfc"] = jax.random.uniform(kfb, (1,), jnp.float32, -bound, bound)
    return p


def _bake_conv_weight(w, gamma, beta, n_tc, tk_cap=16384):
    """Pre-transpose/pad/cast the conv weight once (bf16, tiled layout).

    The conv bias is intentionally dropped: BatchNorm uses batch statistics
    (PyTorch module training-mode default), so a per-channel bias cancels
    exactly in (y - mean). NOT valid if running stats (eval mode) were used.
    """
    Cout, Cin, k = w.shape[0], w.shape[1], w.shape[2]
    K = Cin * k ** 3
    N = Cout
    wm = jnp.transpose(w, (2, 3, 4, 1, 0)).reshape(K, N).astype(jnp.bfloat16)

    # Single full-K tile whenever it fits (layer 2: 8064, layer 3: 16000 with
    # zero K padding); only chunk K for (hypothetical) much larger layers.
    Kp0 = _round_up(K, 128)
    if Kp0 <= tk_cap:
        tk, Kp = Kp0, Kp0
    else:
        n_k = _cdiv(Kp0, tk_cap)
        tk = _round_up(_cdiv(Kp0, n_k), 128)
        Kp = tk * n_k

    # Split N across the two v7x TensorCores only; on 1-TC chips (v5e/v6e)
    # keep one lane-dense tile (extra grid steps there are pure overhead).
    tn = 128 if (n_tc >= 2 and N >= 256) else min(256, _round_up(N, 128))
    Np = _round_up(N, tn)

    wp = jnp.pad(wm, ((0, Kp - K), (0, Np - N)))
    return {
        "w": wp, "K": K, "N": N, "Kp": Kp, "Np": Np, "tk": tk, "tn": tn,
        "g": gamma.astype(jnp.float32), "be": beta.astype(jnp.float32),
        "g_p": jnp.pad(gamma, (0, Np - N)).reshape(1, Np).astype(jnp.float32),
        "be_p": jnp.pad(beta, (0, Np - N)).reshape(1, Np).astype(jnp.float32),
    }


def prepare_params(p, num_tensorcores=None):
    n_tc = _num_tensorcores() if num_tensorcores is None else int(num_tensorcores)
    return {
        "n_tc": n_tc,  # static Python int (do not pass through jit as a leaf)
        "c1": _bake_conv_weight(p["w1"], p["g1"], p["be1"], n_tc),
        "c2": _bake_conv_weight(p["w2"], p["g2"], p["be2"], n_tc),
        "c3": _bake_conv_weight(p["w3"], p["g3"], p["be3"], n_tc),
        "wfc_t": p["wfc"].T.astype(jnp.float32),            # (F, 1)
        "bfc": p["bfc"].astype(jnp.float32),                 # (1,)
        "bfc2": p["bfc"].reshape(1, 1).astype(jnp.float32),  # (1, 1)
    }


# -----------------------------------------------------------------------------
# Forward pass
# -----------------------------------------------------------------------------
def conv_bn_relu_gemm(A, ws, eps, n_tc):
    """A: (M, K) bf16 im2col matrix -> relu(BN(A @ W)) as (M, N) f32."""
    M, K = A.shape
    Kp, Np, N, tk, tn = ws["Kp"], ws["Np"], ws["N"], ws["tk"], ws["tn"]
    n_k, n_n = Kp // tk, Np // tn
    Mp = _round_up(M, 8)

    if n_k == 1 and n_n == 1 and _fused_bytes(Mp, Kp, Np) <= _FUSED_VMEM_BUDGET:
        # Primary path: one pallas_call = conv GEMM + BN batch stats + ReLU.
        # A is padded once, already in bf16 (no f32 staging copy, no XLA
        # mean/var pass over Y).
        a_p = jnp.pad(A, ((0, Mp - M), (0, Kp - K)))
        z = pl.pallas_call(
            _make_conv_bn_relu_kernel(M, eps),
            out_shape=jax.ShapeDtypeStruct((Mp, Np), jnp.float32),
            compiler_params=pltpu.CompilerParams(vmem_limit_bytes=_VMEM_LIMIT),
        )(a_p, ws["w"], ws["g_p"], ws["be_p"])
        return z[:M, :N]

    # Fallback for oversized layers: tiled GEMM, then BN+ReLU.
    # TODO(synk): fold per-N-tile BN stats into the tiled GEMM epilogue.
    want_parallel = (n_tc >= 2 and n_n == 1)
    Mp, tm = _choose_m_tiling(M, tm_cap=512, want_parallel=want_parallel)
    a_p = jnp.pad(A, ((0, Mp - M), (0, Kp - K)))
    y = _gemm_tiled(a_p, ws, tm)[:M, :N]
    mean = jnp.mean(y, axis=0)
    var = jnp.var(y, axis=0)
    scale = ws["g"] * lax.rsqrt(var + eps)
    shift = ws["be"] - mean * scale
    return _bn_relu_tiled(y, scale, shift)


def conv_bn_relu_cl(x_cl, ws, eps, n_tc):
    """x_cl: (B, D, H, W, Cin) channels-last -> (B, Do, Ho, Wo, Cout)."""
    A, (Bn, Do, Ho, Wo) = im2col_3d_cl(x_cl)
    Z = conv_bn_relu_gemm(A, ws, eps, n_tc)
    return Z.reshape(Bn, Do, Ho, Wo, ws["N"])


def discriminator_forward(x, baked, eps=1e-5):
    """x: (B, 1, D, H, W) NCDHW (PyTorch layout) -> (B, 1) sigmoid scores."""
    n_tc = baked["n_tc"]
    x_cl = jnp.transpose(x, (0, 2, 3, 4, 1))            # channels-last once
    h = conv_bn_relu_cl(x_cl, baked["c1"], eps, n_tc)
    h = conv_bn_relu_cl(h, baked["c2"], eps, n_tc)

    # Layer 3 (+ FC + sigmoid tail).
    ws = baked["c3"]
    A, (Bn, Do, Ho, Wo) = im2col_3d_cl(h)
    M, K = A.shape
    Kp, Np, N, tk, tn = ws["Kp"], ws["Np"], ws["N"], ws["tk"], ws["tn"]
    n_n = Np // tn
    Mp = _round_up(M, 8)

    if (Do * Ho * Wo == 1 and Kp == tk
            and _fused_bytes(Mp, Kp, Np) <= _FUSED_VMEM_BUDGET):
        a_p = jnp.pad(A, ((0, Mp - M), (0, Kp - K)))
        if n_n == 1:
            # Single-TensorCore chips (v5e/v6e): one launch for the whole
            # conv3 + BN + ReLU + Linear + sigmoid tail.
            out = pl.pallas_call(
                _make_conv_bn_relu_fc_sigmoid_kernel(M, eps),
                out_shape=jax.ShapeDtypeStruct((Mp, 1), jnp.float32),
                compiler_params=pltpu.CompilerParams(vmem_limit_bytes=_VMEM_LIMIT),
            )(a_p, ws["w"], ws["g_p"], ws["be_p"], baked["wfc_t"], baked["bfc2"])
            return out[:Bn]
        # v7x: split the 8 MB layer-3 weight stream across both TensorCores
        # (two 128-lane N tiles, BN stats are per-channel so fuse per tile),
        # then a tiny FC + sigmoid launch.
        z = pl.pallas_call(
            _make_conv_bn_relu_kernel(M, eps),
            out_shape=jax.ShapeDtypeStruct((Mp, Np), jnp.float32),
            grid_spec=pltpu.PrefetchScalarGridSpec(
                num_scalar_prefetch=0, grid=(1, n_n),
                in_specs=[pl.BlockSpec((Mp, Kp), lambda i, j: (0, 0)),
                          pl.BlockSpec((Kp, tn), lambda i, j: (0, j)),
                          pl.BlockSpec((1, tn), lambda i, j: (0, j)),
                          pl.BlockSpec((1, tn), lambda i, j: (0, j))],
                out_specs=pl.BlockSpec((Mp, tn), lambda i, j: (0, j))),
            compiler_params=pltpu.CompilerParams(
                dimension_semantics=("parallel", "parallel"),
                vmem_limit_bytes=_VMEM_LIMIT),
        )(a_p, ws["w"], ws["g_p"], ws["be_p"])
        out = pl.pallas_call(
            _fc_sigmoid_kernel,
            out_shape=jax.ShapeDtypeStruct((Mp, 1), jnp.float32),
            compiler_params=pltpu.CompilerParams(vmem_limit_bytes=_VMEM_LIMIT),
        )(z, baked["wfc_t"], baked["bfc2"])
        return out[:Bn]

    # TODO(synk): general spatial>1 / oversized layer-3 case keeps the tiny
    # FC + sigmoid in XLA (PyTorch flatten order differs from channels-last).
    Z = conv_bn_relu_gemm(A, ws, eps, n_tc)
    h3 = Z.reshape(Bn, Do, Ho, Wo, -1).transpose(0, 4, 1, 2, 3).reshape(Bn, -1)
    return jax.nn.sigmoid(h3 @ baked["wfc_t"] + baked["bfc"])


# -----------------------------------------------------------------------------
# Pure-JAX reference (numerical validation; includes the conv bias)
# -----------------------------------------------------------------------------
def ref_forward(x, p, eps=1e-5):
    def conv(x, w, b):
        y = lax.conv_general_dilated(
            x, w, window_strides=(2, 2, 2), padding=[(1, 1)] * 3,
            dimension_numbers=("NCDHW", "OIDHW", "NCDHW"))
        return y + b.reshape(1, -1, 1, 1, 1)

    def bn_relu(y, g, be):
        m = y.mean(axis=(0, 2, 3, 4), keepdims=True)
        v = y.var(axis=(0, 2, 3, 4), keepdims=True)
        yn = (y - m) / jnp.sqrt(v + eps)
        yn = yn * g.reshape(1, -1, 1, 1, 1) + be.reshape(1, -1, 1, 1, 1)
        return jnp.maximum(yn, 0.0)

    h = bn_relu(conv(x, p["w1"], p["b1"]), p["g1"], p["be1"])
    h = bn_relu(conv(h, p["w2"], p["b2"]), p["g2"], p["be2"])
    h = bn_relu(conv(h, p["w3"], p["b3"]), p["g3"], p["be3"])
    flat = h.reshape(h.shape[0], -1)
    z = flat @ p["wfc"].T + p["bfc"]
    return jax.nn.sigmoid(z)


if __name__ == "__main__":
    key = jax.random.PRNGKey(0)
    kx, kp = jax.random.split(key)
    # input_size = [B, 1, 16, 16, 16] (small, consistent with the module)
    x = jax.random.uniform(kx, (4, 1, 16, 16, 16), jnp.float32)
    params = init_params(kp)
    baked = prepare_params(params)       # one-time weight baking (bf16, padded)

    out = jax.block_until_ready(discriminator_forward(x, baked))
    ref = jax.block_until_ready(ref_forward(x, params))

    assert out.shape == (4, 1), out.shape
    assert bool(jnp.all(jnp.isfinite(out)))
    # bf16 GEMM operands (f32 accumulation) vs the all-f32 reference.
    assert bool(jnp.allclose(out, ref, rtol=1e-2, atol=1e-2)), (out, ref)

    print("KERNEL_OK")
</pallas_src>

<mosaic_0001>
module attributes {stable_mosaic.version = 11 : i64} {
  func.func @kernel(%arg0: memref<1376x128xbf16, #tpu.memory_space<vmem>>, %arg1: memref<128x128xbf16, #tpu.memory_space<vmem>>, %arg2: memref<1x128xf32, #tpu.memory_space<vmem>>, %arg3: memref<1x128xf32, #tpu.memory_space<vmem>>, %arg4: memref<1376x128xf32, #tpu.memory_space<vmem>>) attributes {dimension_semantics = [], scalar_prefetch = 0 : i64, scratch_operands = 0 : i64, tpu.core_type = #tpu.core_type<tc>} {
    %c0 = arith.constant 0 : index
    %c0_0 = arith.constant 0 : index
    %0 = vector.load %arg0[%c0, %c0_0] : memref<1376x128xbf16, #tpu.memory_space<vmem>>, vector<1376x128xbf16>
    %c0_1 = arith.constant 0 : index
    %c0_2 = arith.constant 0 : index
    %1 = vector.load %arg1[%c0_1, %c0_2] : memref<128x128xbf16, #tpu.memory_space<vmem>>, vector<128x128xbf16>
    %cst = arith.constant dense<0.000000e+00> : vector<1376x128xf32>
    %2 = tpu.matmul %0, %1, %cst {dimension_numbers = #tpu.dot_dimension_numbers<[1], [0], [0], [1], [0, 0, 1, 1], [], []>} : vector<1376x128xbf16>, vector<128x128xbf16>, vector<1376x128xf32> -> vector<1376x128xf32>
    %cst_3 = arith.constant dense<0.000000e+00> : vector<128xf32>
    %3 = vector.multi_reduction <add>, %2, %cst_3 [0] : vector<1376x128xf32> to vector<128xf32>
    %4 = vector.shape_cast %3 : vector<128xf32> to vector<1x128xf32>
    %5 = arith.mulf %2, %2 : vector<1376x128xf32>
    %cst_4 = arith.constant dense<0.000000e+00> : vector<128xf32>
    %6 = vector.multi_reduction <add>, %5, %cst_4 [0] : vector<1376x128xf32> to vector<128xf32>
    %7 = vector.shape_cast %6 : vector<128xf32> to vector<1x128xf32>
    %cst_5 = arith.constant 7.288630e-04 : f32
    %8 = vector.broadcast %cst_5 : f32 to vector<1x128xf32>
    %9 = arith.mulf %4, %8 : vector<1x128xf32>
    %cst_6 = arith.constant 7.288630e-04 : f32
    %10 = vector.broadcast %cst_6 : f32 to vector<1x128xf32>
    %11 = arith.mulf %7, %10 : vector<1x128xf32>
    %12 = arith.mulf %9, %9 : vector<1x128xf32>
    %13 = arith.subf %11, %12 : vector<1x128xf32>
    %cst_7 = arith.constant 0.000000e+00 : f32
    %14 = vector.broadcast %cst_7 : f32 to vector<1x128xf32>
    %15 = arith.maximumf %13, %14 : vector<1x128xf32>
    %c0_8 = arith.constant 0 : index
    %c0_9 = arith.constant 0 : index
    %16 = vector.load %arg2[%c0_8, %c0_9] : memref<1x128xf32, #tpu.memory_space<vmem>>, vector<1x128xf32>
    %cst_10 = arith.constant 9.99999974E-6 : f32
    %17 = vector.broadcast %cst_10 : f32 to vector<1x128xf32>
    %18 = arith.addf %15, %17 : vector<1x128xf32>
    %19 = math.rsqrt %18 : vector<1x128xf32>
    %20 = arith.mulf %16, %19 : vector<1x128xf32>
    %c0_11 = arith.constant 0 : index
    %c0_12 = arith.constant 0 : index
    %21 = vector.load %arg3[%c0_11, %c0_12] : memref<1x128xf32, #tpu.memory_space<vmem>>, vector<1x128xf32>
    %22 = arith.mulf %9, %20 : vector<1x128xf32>
    %23 = arith.subf %21, %22 : vector<1x128xf32>
    %24 = vector.broadcast %20 : vector<1x128xf32> to vector<1376x128xf32>
    %25 = arith.mulf %2, %24 : vector<1376x128xf32>
    %26 = vector.broadcast %23 : vector<1x128xf32> to vector<1376x128xf32>
    %27 = arith.addf %25, %26 : vector<1376x128xf32>
    %cst_13 = arith.constant 0.000000e+00 : f32
    %28 = vector.broadcast %cst_13 : f32 to vector<1376x128xf32>
    %29 = arith.maximumf %27, %28 : vector<1376x128xf32>
    %c0_14 = arith.constant 0 : index
    %c0_15 = arith.constant 0 : index
    %30 = vector.load %arg4[%c0_14, %c0_15] : memref<1376x128xf32, #tpu.memory_space<vmem>>, vector<1376x128xf32>
    tpu.vector_store %arg4[%c0_14, %c0_15], %29 {strides = array<i32>} : memref<1376x128xf32, #tpu.memory_space<vmem>>, vector<1376x128xf32>,
    return
  }
}

</mosaic_0001>

<llo_original>
// kernel: tpu_custom_call.1
$region0: #{tpu_custom_call.1}
  #allocation0 [shape = 'u32[]', space=smem, size = 0x4, offset = 0x4, fixed_abs, tag = 'smem constant byte address 0x4 - core index']
  #allocation1 [shape = 'u32[144,128]{1,0:T(1,128)}', space=vmem, size = 0x12000, scoped, tag = 'internal scratch']
  %s0 = inlined_call_operand.hbm [shape: bf16[1376,128], index: 0, kind: input, shape index: {}]
  %s1 = inlined_call_operand.hbm [shape: bf16[128,128], index: 1, kind: input, shape index: {}]
  %s2 = inlined_call_operand.vmem [shape: f32[1,128], index: 2, kind: input, shape index: {}]
  %s3 = inlined_call_operand.vmem [shape: f32[1,128], index: 3, kind: input, shape index: {}]
  %s4 = inlined_call_operand.hbm [shape: f32[1376,128], index: 4, kind: output, shape index: {}]
  %s5 = sld [smem:[#allocation0]]
  $region34: #{tpu_custom_call.1} parent=0
    _
  %s7 = ssub.s32 1, %s5
  %s8 = scalar_select 0, %s7, %s5
  $region1: #{tpu_custom_call.1} parent=0
    #allocation2 [shape = 'u8[352256]{0}', space=vmem, size = 0x56000, scoped, tag = 'input window, operand 0, single buffered']
    #allocation3 [shape = 's32[1]{0}', space=sflag, size = 0x4, scoped, tag = 'scoped memory for tpu_custom_call.1']
    #allocation4 [shape = 's32[1]{0}', space=sflag, size = 0x4, scoped, tag = 'scoped memory for tpu_custom_call.1']
    #allocation5 [shape = 'u8[32768]{0}', space=vmem, size = 0x8000, scoped, tag = 'input window, operand 1, single buffered']
    #allocation6 [shape = 's32[1]{0}', space=sflag, size = 0x4, scoped, tag = 'scoped memory for tpu_custom_call.1']
    #allocation7 [shape = 'u8[704512]{0}', space=vmem, size = 0xac000, scoped, tag = 'output window, operand 0, single buffered']
    %9 = vsyncpa [#allocation3], 0
    %10 = vsyncpa [#allocation6], 0
    %11 = vsyncpa [#allocation4], 0
    // Predicated region
    $region2: #{tpu_custom_call.1} parent=1 // pred_check
      _
    $region3: #{tpu_custom_call.1} parent=1 // pred_check_branch
      %13 = sbr.rel (0) target = $region5
    $region4: #{tpu_custom_call.1} parent=1 // pred_region
      %s15 = ssub.s32 11008, 11008
      %16 = vsyncadd [#allocation3], %s15
      %s17 = sshll.u32 [#allocation2], 4
      %s18 = int_to_ptr.vmem [resolvable:$true] %s17
      %23 = dma.hbm_to_vmem [thread:$0]  %s0, 11008, %s18, [#allocation3], 64, 64, 4
    $region5: #{tpu_custom_call.1} parent=1 // pred_fallthru
      _
    // Predicated region
    $region6: #{tpu_custom_call.1} parent=1 // pred_check
      _
    $region7: #{tpu_custom_call.1} parent=1 // pred_check_branch
      %25 = sbr.rel (0) target = $region9
    $region8: #{tpu_custom_call.1} parent=1 // pred_region
      %s27 = ssub.s32 1024, 1024
      %28 = vsyncadd [#allocation6], %s27
      %s29 = sshll.u32 [#allocation5], 4
      %s30 = int_to_ptr.vmem [resolvable:$true] %s29
      %35 = dma.hbm_to_vmem [thread:$0]  %s1, 1024, %s30, [#allocation6], 64, 64, 4
    $region9: #{tpu_custom_call.1} parent=1 // pred_fallthru
      _
    // Predicated region
    $region10: #{tpu_custom_call.1} parent=1 // pred_check
      _
    $region11: #{tpu_custom_call.1} parent=1 // pred_check_branch
      %37 = sbr.rel (0) target = $region13
    $region12: #{tpu_custom_call.1} parent=1 // pred_region
      _
    $region13: #{tpu_custom_call.1} parent=1 // pred_fallthru
      _
    // Predicated region
    $region14: #{tpu_custom_call.1} parent=1 // pred_check
      _
    $region15: #{tpu_custom_call.1} parent=1 // pred_check_branch
      %39 = sbr.rel (0) target = $region17
    $region16: #{tpu_custom_call.1} parent=1 // pred_region
      _
    $region17: #{tpu_custom_call.1} parent=1 // pred_fallthru
      _
    // Predicated region
    $region18: #{tpu_custom_call.1} parent=1 // pred_check
      _
    $region19: #{tpu_custom_call.1} parent=1 // pred_check_branch
      %41 = sbr.rel (0) target = $region21
    $region20: #{tpu_custom_call.1} parent=1 // pred_region
      %42 = dma.done [#allocation3], 11008
    $region21: #{tpu_custom_call.1} parent=1 // pred_fallthru
      _
    // Predicated region
    $region22: #{tpu_custom_call.1} parent=1 // pred_check
      _
    $region23: #{tpu_custom_call.1} parent=1 // pred_check_branch
      %44 = sbr.rel (0) target = $region25
    $region24: #{tpu_custom_call.1} parent=1 // pred_region
      %45 = dma.done [#allocation6], 1024
    $region25: #{tpu_custom_call.1} parent=1 // pred_fallthru
      _
    %v47 = vld [vmem:[#allocation2] sm:$0xf]
    %v48 = vld [vmem:[#allocation2 + $0x4] sm:$0xf]
    %v49 = vld [vmem:[#allocation2 + $0x8] sm:$0xf]
    %v50 = vld [vmem:[#allocation2 + $0xc] sm:$0xf]
    %v51 = vld [vmem:[#allocation2 + $0x10] sm:$0xf]
    %v52 = vld [vmem:[#allocation2 + $0x14] sm:$0xf]
    %v53 = vld [vmem:[#allocation2 + $0x18] sm:$0xf]
    %v54 = vld [vmem:[#allocation2 + $0x1c] sm:$0xf]
    %v55 = vld [vmem:[#allocation2 + $0x20] sm:$0xf]
    %v56 = vld [vmem:[#allocation2 + $0x24] sm:$0xf]
    %v57 = vld [vmem:[#allocation2 + $0x28] sm:$0xf]
    %v58 = vld [vmem:[#allocation2 + $0x2c] sm:$0xf]
    %v59 = vld [vmem:[#allocation2 + $0x30] sm:$0xf]
    %v60 = vld [vmem:[#allocation2 + $0x34] sm:$0xf]
    %v61 = vld [vmem:[#allocation2 + $0x38] sm:$0xf]
    %v62 = vld [vmem:[#allocation2 + $0x3c] sm:$0xf]
    %v63 = vld [vmem:[#allocation2 + $0x40] sm:$0xf]
    %v64 = vld [vmem:[#allocation2 + $0x44] sm:$0xf]
    %v65 = vld [vmem:[#allocation2 + $0x48] sm:$0xf]
    %v66 = vld [vmem:[#allocation2 + $0x4c] sm:$0xf]
    %v67 = vld [vmem:[#allocation2 + $0x50] sm:$0xf]
    %v68 = vld [vmem:[#allocation2 + $0x54] sm:$0xf]
    %v69 = vld [vmem:[#allocation2 + $0x58] sm:$0xf]
    %v70 = vld [vmem:[#allocation2 + $0x5c] sm:$0xf]
    %v71 = vld [vmem:[#allocation2 + $0x60] sm:$0xf]
    %v72 = vld [vmem:[#allocation2 + $0x64] sm:$0xf]
    %v73 = vld [vmem:[#allocation2 + $0x68] sm:$0xf]
    %v74 = vld [vmem:[#allocation2 + $0x6c] sm:$0xf]
    %v75 = vld [vmem:[#allocation2 + $0x70] sm:$0xf]
    %v76 = vld [vmem:[#allocation2 + $0x74] sm:$0xf]
    %v77 = vld [vmem:[#allocation2 + $0x78] sm:$0xf]
    %v78 = vld [vmem:[#allocation2 + $0x7c] sm:$0xf]
    %v79 = vld [vmem:[#allocation2 + $0x80] sm:$0xf]
    %v80 = vld [vmem:[#allocation2 + $0x84] sm:$0xf]
    %v81 = vld [vmem:[#allocation2 + $0x88] sm:$0xf]
    %v82 = vld [vmem:[#allocation2 + $0x8c] sm:$0xf]
    %v83 = vld [vmem:[#allocation2 + $0x90] sm:$0xf]
    %v84 = vld [vmem:[#allocation2 + $0x94] sm:$0xf]
    %v85 = vld [vmem:[#allocation2 + $0x98] sm:$0xf]
    %v86 = vld [vmem:[#allocation2 + $0x9c] sm:$0xf]
    %v87 = vld [vmem:[#allocation2 + $0xa0] sm:$0xf]
    %v88 = vld [vmem:[#allocation2 + $0xa4] sm:$0xf]
    %v89 = vld [vmem:[#allocation2 + $0xa8] sm:$0xf]
    %v90 = vld [vmem:[#allocation2 + $0xac] sm:$0xf]
    %v91 = vld [vmem:[#allocation2 + $0xb0] sm:$0xf]
    %v92 = vld [vmem:[#allocation2 + $0xb4] sm:$0xf]
    %v93 = vld [vmem:[#allocation2 + $0xb8] sm:$0xf]
    %v94 = vld [vmem:[#allocation2 + $0xbc] sm:$0xf]
    %v95 = vld [vmem:[#allocation2 + $0xc0] sm:$0xf]
    %v96 = vld [vmem:[#allocation2 + $0xc4] sm:$0xf]
    %v97 = vld [vmem:[#allocation2 + $0xc8] sm:$0xf]
    %v98 = vld [vmem:[#allocation2 + $0xcc] sm:$0xf]
    %v99 = vld [vmem:[#allocation2 + $0xd0] sm:$0xf]
    %v100 = vld [vmem:[#allocation2 + $0xd4] sm:$0xf]
    %v101 = vld [vmem:[#allocation2 + $0xd8] sm:$0xf]
    %v102 = vld [vmem:[#allocation2 + $0xdc] sm:$0xf]
    %v103 = vld [vmem:[#allocation2 + $0xe0] sm:$0xf]
    %v104 = vld [vmem:[#allocation2 + $0xe4] sm:$0xf]
    %v105 = vld [vmem:[#allocation2 + $0xe8] sm:$0xf]
    %v106 = vld [vmem:[#allocation2 + $0xec] sm:$0xf]
    %v107 = vld [vmem:[#allocation2 + $0xf0] sm:$0xf]
    %v108 = vld [vmem:[#allocation2 + $0xf4] sm:$0xf]
    %v109 = vld [vmem:[#allocation2 + $0xf8] sm:$0xf]
    %v110 = vld [vmem:[#allocation2 + $0xfc] sm:$0xf]
    %v111 = vld [vmem:[#allocation2 + $0x100] sm:$0xf]
    %v112 = vld [vmem:[#allocation2 + $0x104] sm:$0xf]
    %v113 = vld [vmem:[#allocation2 + $0x108] sm:$0xf]
    %v114 = vld [vmem:[#allocation2 + $0x10c] sm:$0xf]
    %v115 = vld [vmem:[#allocation2 + $0x110] sm:$0xf]
    %v116 = vld [vmem:[#allocation2 + $0x114] sm:$0xf]
    %v117 = vld [vmem:[#allocation2 + $0x118] sm:$0xf]
    %v118 = vld [vmem:[#allocation2 + $0x11c] sm:$0xf]
    %v119 = vld [vmem:[#allocation2 + $0x120] sm:$0xf]
    %v120 = vld [vmem:[#allocation2 + $0x124] sm:$0xf]
    %v121 = vld [vmem:[#allocation2 + $0x128] sm:$0xf]
    %v122 = vld [vmem:[#allocation2 + $0x12c] sm:$0xf]
    %v123 = vld [vmem:[#allocation2 + $0x130] sm:$0xf]
    %v124 = vld [vmem:[#allocation2 + $0x134] sm:$0xf]
    %v125 = vld [vmem:[#allocation2 + $0x138] sm:$0xf]
    %v126 = vld [vmem:[#allocation2 + $0x13c] sm:$0xf]
    %v127 = vld [vmem:[#allocation2 + $0x140] sm:$0xf]
    %v128 = vld [vmem:[#allocation2 + $0x144] sm:$0xf]
    %v129 = vld [vmem:[#allocation2 + $0x148] sm:$0xf]
    %v130 = vld [vmem:[#allocation2 + $0x14c] sm:$0xf]
    %v131 = vld [vmem:[#allocation2 + $0x150] sm:$0xf]
    %v132 = vld [vmem:[#allocation2 + $0x154] sm:$0xf]
    %v133 = vld [vmem:[#allocation2 + $0x158] sm:$0xf]
    %v134 = vld [vmem:[#allocation2 + $0x15c] sm:$0xf]
    %v135 = vld [vmem:[#allocation2 + $0x160] sm:$0xf]
    %v136 = vld [vmem:[#allocation2 + $0x164] sm:$0xf]
    %v137 = vld [vmem:[#allocation2 + $0x168] sm:$0xf]
    %v138 = vld [vmem:[#allocation2 + $0x16c] sm:$0xf]
    %v139 = vld [vmem:[#allocation2 + $0x170] sm:$0xf]
    %v140 = vld [vmem:[#allocation2 + $0x174] sm:$0xf]
    %v141 = vld [vmem:[#allocation2 + $0x178] sm:$0xf]
    %v142 = vld [vmem:[#allocation2 + $0x17c] sm:$0xf]
    %v143 = vld [vmem:[#allocation2 + $0x180] sm:$0xf]
    %v144 = vld [vmem:[#allocation2 + $0x184] sm:$0xf]
    %v145 = vld [vmem:[#allocation2 + $0x188] sm:$0xf]
    %v146 = vld [vmem:[#allocation2 + $0x18c] sm:$0xf]
    %v147 = vld [vmem:[#allocation2 + $0x190] sm:$0xf]
    %v148 = vld [vmem:[#allocation2 + $0x194] sm:$0xf]
    %v149 = vld [vmem:[#allocation2 + $0x198] sm:$0xf]
    %v150 = vld [vmem:[#allocation2 + $0x19c] sm:$0xf]
    %v151 = vld [vmem:[#allocation2 + $0x1a0] sm:$0xf]
    %v152 = vld [vmem:[#allocation2 + $0x1a4] sm:$0xf]
    %v153 = vld [vmem:[#allocation2 + $0x1a8] sm:$0xf]
    %v154 = vld [vmem:[#allocation2 + $0x1ac] sm:$0xf]
    %v155 = vld [vmem:[#allocation2 + $0x1b0] sm:$0xf]
    %v156 = vld [vmem:[#allocation2 + $0x1b4] sm:$0xf]
    %v157 = vld [vmem:[#allocation2 + $0x1b8] sm:$0xf]
    %v158 = vld [vmem:[#allocation2 + $0x1bc] sm:$0xf]
    %v159 = vld [vmem:[#allocation2 + $0x1c0] sm:$0xf]
    %v160 = vld [vmem:[#allocation2 + $0x1c4] sm:$0xf]
    %v161 = vld [vmem:[#allocation2 + $0x1c8] sm:$0xf]
    %v162 = vld [vmem:[#allocation2 + $0x1cc] sm:$0xf]
    %v163 = vld [vmem:[#allocation2 + $0x1d0] sm:$0xf]
    %v164 = vld [vmem:[#allocation2 + $0x1d4] sm:$0xf]
    %v165 = vld [vmem:[#allocation2 + $0x1d8] sm:$0xf]
    %v166 = vld [vmem:[#allocation2 + $0x1dc] sm:$0xf]
    %v167 = vld [vmem:[#allocation2 + $0x1e0] sm:$0xf]
    %v168 = vld [vmem:[#allocation2 + $0x1e4] sm:$0xf]
    %v169 = vld [vmem:[#allocation2 + $0x1e8] sm:$0xf]
    %v170 = vld [vmem:[#allocation2 + $0x1ec] sm:$0xf]
    %v171 = vld [vmem:[#allocation2 + $0x1f0] sm:$0xf]
    %v172 = vld [vmem:[#allocation2 + $0x1f4] sm:$0xf]
    %v173 = vld [vmem:[#allocation2 + $0x1f8] sm:$0xf]
    %v174 = vld [vmem:[#allocation2 + $0x1fc] sm:$0xf]
    %v175 = vld [vmem:[#allocation2 + $0x200] sm:$0xf]
    %v176 = vld [vmem:[#allocation2 + $0x204] sm:$0xf]
    %v177 = vld [vmem:[#allocation2 + $0x208] sm:$0xf]
    %v178 = vld [vmem:[#allocation2 + $0x20c] sm:$0xf]
    %v179 = vld [vmem:[#allocation2 + $0x210] sm:$0xf]
    %v180 = vld [vmem:[#allocation2 + $0x214] sm:$0xf]
    %v181 = vld [vmem:[#allocation2 + $0x218] sm:$0xf]
    %v182 = vld [vmem:[#allocation2 + $0x21c] sm:$0xf]
    %v183 = vld [vmem:[#allocation2 + $0x220] sm:$0xf]
    %v184 = vld [vmem:[#allocation2 + $0x224] sm:$0xf]
    %v185 = vld [vmem:[#allocation2 + $0x228] sm:$0xf]
    %v186 = vld [vmem:[#allocation2 + $0x22c] sm:$0xf]
    %v187 = vld [vmem:[#allocation2 + $0x230] sm:$0xf]
    %v188 = vld [vmem:[#allocation2 + $0x234] sm:$0xf]
    %v189 = vld [vmem:[#allocation2 + $0x238] sm:$0xf]
    %v190 = vld [vmem:[#allocation2 + $0x23c] sm:$0xf]
    %v191 = vld [vmem:[#allocation2 + $0x240] sm:$0xf]
    %v192 = vld [vmem:[#allocation2 + $0x244] sm:$0xf]
    %v193 = vld [vmem:[#allocation2 + $0x248] sm:$0xf]
    %v194 = vld [vmem:[#allocation2 + $0x24c] sm:$0xf]
    %v195 = vld [vmem:[#allocation2 + $0x250] sm:$0xf]
    %v196 = vld [vmem:[#allocation2 + $0x254] sm:$0xf]
    %v197 = vld [vmem:[#allocation2 + $0x258] sm:$0xf]
    %v198 = vld [vmem:[#allocation2 + $0x25c] sm:$0xf]
    %v199 = vld [vmem:[#allocation2 + $0x260] sm:$0xf]
    %v200 = vld [vmem:[#allocation2 + $0x264] sm:$0xf]
    %v201 = vld [vmem:[#allocation2 + $0x268] sm:$0xf]
    %v202 = vld [vmem:[#allocation2 + $0x26c] sm:$0xf]
    %v203 = vld [vmem:[#allocation2 + $0x270] sm:$0xf]
    %v204 = vld [vmem:[#allocation2 + $0x274] sm:$0xf]
    %v205 = vld [vmem:[#allocation2 + $0x278] sm:$0xf]
    %v206 = vld [vmem:[#allocation2 + $0x27c] sm:$0xf]
    %v207 = vld [vmem:[#allocation2 + $0x280] sm:$0xf]
    %v208 = vld [vmem:[#allocation2 + $0x284] sm:$0xf]
    %v209 = vld [vmem:[#allocation2 + $0x288] sm:$0xf]
    %v210 = vld [vmem:[#allocation2 + $0x28c] sm:$0xf]
    %v211 = vld [vmem:[#allocation2 + $0x290] sm:$0xf]
    %v212 = vld [vmem:[#allocation2 + $0x294] sm:$0xf]
    %v213 = vld [vmem:[#allocation2 + $0x298] sm:$0xf]
    %v214 = vld [vmem:[#allocation2 + $0x29c] sm:$0xf]
    %v215 = vld [vmem:[#allocation2 + $0x2a0] sm:$0xf]
    %v216 = vld [vmem:[#allocation2 + $0x2a4] sm:$0xf]
    %v217 = vld [vmem:[#allocation2 + $0x2a8] sm:$0xf]
    %v218 = vld [vmem:[#allocation2 + $0x2ac] sm:$0xf]
    %v219 = vld [vmem:[#allocation5] sm:$0xf]
    %v220 = vld [vmem:[#allocation5 + $0x4] sm:$0xf]
    %v221 = vld [vmem:[#allocation5 + $0x8] sm:$0xf]
    %v222 = vld [vmem:[#allocation5 + $0xc] sm:$0xf]
    %v223 = vld [vmem:[#allocation5 + $0x10] sm:$0xf]
    %v224 = vld [vmem:[#allocation5 + $0x14] sm:$0xf]
    %v225 = vld [vmem:[#allocation5 + $0x18] sm:$0xf]
    %v226 = vld [vmem:[#allocation5 + $0x1c] sm:$0xf]
    %v227 = vld [vmem:[#allocation5 + $0x20] sm:$0xf]
    %v228 = vld [vmem:[#allocation5 + $0x24] sm:$0xf]
    %v229 = vld [vmem:[#allocation5 + $0x28] sm:$0xf]
    %v230 = vld [vmem:[#allocation5 + $0x2c] sm:$0xf]
    %v231 = vld [vmem:[#allocation5 + $0x30] sm:$0xf]
    %v232 = vld [vmem:[#allocation5 + $0x34] sm:$0xf]
    %v233 = vld [vmem:[#allocation5 + $0x38] sm:$0xf]
    %v234 = vld [vmem:[#allocation5 + $0x3c] sm:$0xf]
    %v407 = vunpack.c.l.b16 %v47
    %v408 = vunpack.c.l.b16 %v48
    %v409 = vunpack.c.l.b16 %v49
    %v410 = vunpack.c.l.b16 %v50
    %v411 = vunpack.c.l.b16 %v51
    %v412 = vunpack.c.l.b16 %v52
    %v413 = vunpack.c.l.b16 %v53
    %v414 = vunpack.c.l.b16 %v54
    %v415 = vunpack.c.l.b16 %v55
    %v416 = vunpack.c.l.b16 %v56
    %v417 = vunpack.c.l.b16 %v57
    %v418 = vunpack.c.l.b16 %v58
    %v419 = vunpack.c.l.b16 %v59
    %v420 = vunpack.c.l.b16 %v60
    %v421 = vunpack.c.l.b16 %v61
    %v422 = vunpack.c.l.b16 %v62
    %v423 = vunpack.c.l.b16 %v63
    %v424 = vunpack.c.l.b16 %v64
    %v425 = vunpack.c.l.b16 %v65
    %v426 = vunpack.c.l.b16 %v66
    %v427 = vunpack.c.l.b16 %v67
    %v428 = vunpack.c.l.b16 %v68
    %v429 = vunpack.c.l.b16 %v69
    %v430 = vunpack.c.l.b16 %v70
    %v431 = vunpack.c.l.b16 %v71
    %v432 = vunpack.c.l.b16 %v72
    %v433 = vunpack.c.l.b16 %v73
    %v434 = vunpack.c.l.b16 %v74
    %v435 = vunpack.c.l.b16 %v75
    %v436 = vunpack.c.l.b16 %v76
    %v437 = vunpack.c.l.b16 %v77
    %v438 = vunpack.c.l.b16 %v78
    %v439 = vunpack.c.l.b16 %v79
    %v440 = vunpack.c.l.b16 %v80
    %v441 = vunpack.c.l.b16 %v81
    %v442 = vunpack.c.l.b16 %v82
    %v443 = vunpack.c.l.b16 %v83
    %v444 = vunpack.c.l.b16 %v84
    %v445 = vunpack.c.l.b16 %v85
    %v446 = vunpack.c.l.b16 %v86
    %v447 = vunpack.c.l.b16 %v87
    %v448 = vunpack.c.l.b16 %v88
    %v449 = vunpack.c.l.b16 %v89
    %v450 = vunpack.c.l.b16 %v90
    %v451 = vunpack.c.l.b16 %v91
    %v452 = vunpack.c.l.b16 %v92
    %v453 = vunpack.c.l.b16 %v93
    %v454 = vunpack.c.l.b16 %v94
    %v455 = vunpack.c.l.b16 %v95
    %v456 = vunpack.c.l.b16 %v96
    %v457 = vunpack.c.l.b16 %v97
    %v458 = vunpack.c.l.b16 %v98
    %v459 = vunpack.c.l.b16 %v99
    %v460 = vunpack.c.l.b16 %v100
    %v461 = vunpack.c.l.b16 %v101
    %v462 = vunpack.c.l.b16 %v102
    %v463 = vunpack.c.l.b16 %v103
    %v464 = vunpack.c.l.b16 %v104
    %v465 = vunpack.c.l.b16 %v105
    %v466 = vunpack.c.l.b16 %v106
    %v467 = vunpack.c.l.b16 %v107
    %v468 = vunpack.c.l.b16 %v108
    %v469 = vunpack.c.l.b16 %v109
    %v470 = vunpack.c.l.b16 %v110
    %v471 = vunpack.c.l.b16 %v111
    %v472 = vunpack.c.l.b16 %v112
    %v473 = vunpack.c.l.b16 %v113
    %v474 = vunpack.c.l.b16 %v114
    %v475 = vunpack.c.l.b16 %v115
    %v476 = vunpack.c.l.b16 %v116
    %v477 = vunpack.c.l.b16 %v117
    %v478 = vunpack.c.l.b16 %v118
    %v479 = vunpack.c.l.b16 %v119
    %v480 = vunpack.c.l.b16 %v120
    %v481 = vunpack.c.l.b16 %v121
    %v482 = vunpack.c.l.b16 %v122
    %v483 = vunpack.c.l.b16 %v123
    %v484 = vunpack.c.l.b16 %v124
    %v485 = vunpack.c.l.b16 %v125
    %v486 = vunpack.c.l.b16 %v126
    %v487 = vunpack.c.l.b16 %v127
    %v488 = vunpack.c.l.b16 %v128
    %v489 = vunpack.c.l.b16 %v129
    %v490 = vunpack.c.l.b16 %v130
    %v491 = vunpack.c.l.b16 %v131
    %v492 = vunpack.c.l.b16 %v132
    %v493 = vunpack.c.l.b16 %v133
    %v494 = vunpack.c.l.b16 %v134
    %v495 = vunpack.c.l.b16 %v135
    %v496 = vunpack.c.l.b16 %v136
    %v497 = vunpack.c.l.b16 %v137
    %v498 = vunpack.c.l.b16 %v138
    %v499 = vunpack.c.l.b16 %v139
    %v500 = vunpack.c.l.b16 %v140
    %v501 = vunpack.c.l.b16 %v141
    %v502 = vunpack.c.l.b16 %v142
    %v503 = vunpack.c.l.b16 %v143
    %v504 = vunpack.c.l.b16 %v144
    %v505 = vunpack.c.l.b16 %v145
    %v506 = vunpack.c.l.b16 %v146
    %v507 = vunpack.c.l.b16 %v147
    %v508 = vunpack.c.l.b16 %v148
    %v509 = vunpack.c.l.b16 %v149
    %v510 = vunpack.c.l.b16 %v150
    %v511 = vunpack.c.l.b16 %v151
    %v512 = vunpack.c.l.b16 %v152
    %v513 = vunpack.c.l.b16 %v153
    %v514 = vunpack.c.l.b16 %v154
    %v515 = vunpack.c.l.b16 %v155
    %v516 = vunpack.c.l.b16 %v156
    %v517 = vunpack.c.l.b16 %v157
    %v518 = vunpack.c.l.b16 %v158
    %v519 = vunpack.c.l.b16 %v159
    %v520 = vunpack.c.l.b16 %v160
    %v521 = vunpack.c.l.b16 %v161
    %v522 = vunpack.c.l.b16 %v162
    %v523 = vunpack.c.l.b16 %v163
    %v524 = vunpack.c.l.b16 %v164
    %v525 = vunpack.c.l.b16 %v165
    %v526 = vunpack.c.l.b16 %v166
    %v527 = vunpack.c.l.b16 %v167
    %v528 = vunpack.c.l.b16 %v168
    %v529 = vunpack.c.l.b16 %v169
    %v530 = vunpack.c.l.b16 %v170
    %v531 = vunpack.c.l.b16 %v171
    %v532 = vunpack.c.l.b16 %v172
    %v533 = vunpack.c.l.b16 %v173
    %v534 = vunpack.c.l.b16 %v174
    %v535 = vunpack.c.l.b16 %v175
    %v536 = vunpack.c.l.b16 %v176
    %v537 = vunpack.c.l.b16 %v177
    %v538 = vunpack.c.l.b16 %v178
    %v539 = vunpack.c.l.b16 %v179
    %v540 = vunpack.c.l.b16 %v180
    %v541 = vunpack.c.l.b16 %v181
    %v542 = vunpack.c.l.b16 %v182
    %v543 = vunpack.c.l.b16 %v183
    %v544 = vunpack.c.l.b16 %v184
    %v545 = vunpack.c.l.b16 %v185
    %v546 = vunpack.c.l.b16 %v186
    %v547 = vunpack.c.l.b16 %v187
    %v548 = vunpack.c.l.b16 %v188
    %v549 = vunpack.c.l.b16 %v189
    %v550 = vunpack.c.l.b16 %v190
    %v551 = vunpack.c.l.b16 %v191
    %v552 = vunpack.c.l.b16 %v192
    %v553 = vunpack.c.l.b16 %v193
    %v554 = vunpack.c.l.b16 %v194
    %v555 = vunpack.c.l.b16 %v195
    %v556 = vunpack.c.l.b16 %v196
    %v557 = vunpack.c.l.b16 %v197
    %v558 = vunpack.c.l.b16 %v198
    %v559 = vunpack.c.l.b16 %v199
    %v560 = vunpack.c.l.b16 %v200
    %v561 = vunpack.c.l.b16 %v201
    %v562 = vunpack.c.l.b16 %v202
    %v563 = vunpack.c.l.b16 %v203
    %v564 = vunpack.c.l.b16 %v204
    %v565 = vunpack.c.l.b16 %v205
    %v566 = vunpack.c.l.b16 %v206
    %v567 = vunpack.c.l.b16 %v207
    %v568 = vunpack.c.l.b16 %v208
    %v569 = vunpack.c.l.b16 %v209
    %v570 = vunpack.c.l.b16 %v210
    %v571 = vunpack.c.l.b16 %v211
    %v572 = vunpack.c.l.b16 %v212
    %v573 = vunpack.c.l.b16 %v213
    %v574 = vunpack.c.l.b16 %v214
    %v575 = vunpack.c.l.b16 %v215
    %v576 = vunpack.c.l.b16 %v216
    %v577 = vunpack.c.l.b16 %v217
    %v578 = vunpack.c.l.b16 %v218
    %v579 = vpack.c.b16 %v408, %v407
    %v580 = vpack.c.b16 %v410, %v409
    %v581 = vpack.c.b16 %v412, %v411
    %v582 = vpack.c.b16 %v414, %v413
    %v583 = vpack.c.b16 %v416, %v415
    %v584 = vpack.c.b16 %v418, %v417
    %v585 = vpack.c.b16 %v420, %v419
    %v586 = vpack.c.b16 %v422, %v421
    %v587 = vpack.c.b16 %v424, %v423
    %v588 = vpack.c.b16 %v426, %v425
    %v589 = vpack.c.b16 %v428, %v427
    %v590 = vpack.c.b16 %v430, %v429
    %v591 = vpack.c.b16 %v432, %v431
    %v592 = vpack.c.b16 %v434, %v433
    %v593 = vpack.c.b16 %v436, %v435
    %v594 = vpack.c.b16 %v438, %v437
    %v595 = vpack.c.b16 %v440, %v439
    %v596 = vpack.c.b16 %v442, %v441
    %v597 = vpack.c.b16 %v444, %v443
    %v598 = vpack.c.b16 %v446, %v445
    %v599 = vpack.c.b16 %v448, %v447
    %v600 = vpack.c.b16 %v450, %v449
    %v601 = vpack.c.b16 %v452, %v451
    %v602 = vpack.c.b16 %v454, %v453
    %v603 = vpack.c.b16 %v456, %v455
    %v604 = vpack.c.b16 %v458, %v457
    %v605 = vpack.c.b16 %v460, %v459
    %v606 = vpack.c.b16 %v462, %v461
    %v607 = vpack.c.b16 %v464, %v463
    %v608 = vpack.c.b16 %v466, %v465
    %v609 = vpack.c.b16 %v468, %v467
    %v610 = vpack.c.b16 %v470, %v469
    %v611 = vpack.c.b16 %v472, %v471
    %v612 = vpack.c.b16 %v474, %v473
    %v613 = vpack.c.b16 %v476, %v475
    %v614 = vpack.c.b16 %v478, %v477
    %v615 = vpack.c.b16 %v480, %v479
    %v616 = vpack.c.b16 %v482, %v481
    %v617 = vpack.c.b16 %v484, %v483
    %v618 = vpack.c.b16 %v486, %v485
    %v619 = vpack.c.b16 %v488, %v487
    %v620 = vpack.c.b16 %v490, %v489
    %v621 = vpack.c.b16 %v492, %v491
    %v622 = vpack.c.b16 %v494, %v493
    %v623 = vpack.c.b16 %v496, %v495
    %v624 = vpack.c.b16 %v498, %v497
    %v625 = vpack.c.b16 %v500, %v499
    %v626 = vpack.c.b16 %v502, %v501
    %v627 = vpack.c.b16 %v504, %v503
    %v628 = vpack.c.b16 %v506, %v505
    %v629 = vpack.c.b16 %v508, %v507
    %v630 = vpack.c.b16 %v510, %v509
    %v631 = vpack.c.b16 %v512, %v511
    %v632 = vpack.c.b16 %v514, %v513
    %v633 = vpack.c.b16 %v516, %v515
    %v634 = vpack.c.b16 %v518, %v517
    %v635 = vpack.c.b16 %v520, %v519
    %v636 = vpack.c.b16 %v522, %v521
    %v637 = vpack.c.b16 %v524, %v523
    %v638 = vpack.c.b16 %v526, %v525
    %v639 = vpack.c.b16 %v528, %v527
    %v640 = vpack.c.b16 %v530, %v529
    %v641 = vpack.c.b16 %v532, %v531
    %v642 = vpack.c.b16 %v534, %v533
    %v643 = vpack.c.b16 %v536, %v535
    %v644 = vpack.c.b16 %v538, %v537
    %v645 = vpack.c.b16 %v540, %v539
    %v646 = vpack.c.b16 %v542, %v541
    %v647 = vpack.c.b16 %v544, %v543
    %v648 = vpack.c.b16 %v546, %v545
    %v649 = vpack.c.b16 %v548, %v547
    %v650 = vpack.c.b16 %v550, %v549
    %v651 = vpack.c.b16 %v552, %v551
    %v652 = vpack.c.b16 %v554, %v553
    %v653 = vpack.c.b16 %v556, %v555
    %v654 = vpack.c.b16 %v558, %v557
    %v655 = vpack.c.b16 %v560, %v559
    %v656 = vpack.c.b16 %v562, %v561
    %v657 = vpack.c.b16 %v564, %v563
    %v658 = vpack.c.b16 %v566, %v565
    %v659 = vpack.c.b16 %v568, %v567
    %v660 = vpack.c.b16 %v570, %v569
    %v661 = vpack.c.b16 %v572, %v571
    %v662 = vpack.c.b16 %v574, %v573
    %v663 = vpack.c.b16 %v576, %v575
    %v664 = vpack.c.b16 %v578, %v577
    %v767 = vunpack.c.l.b16 %v219
    %v768 = vunpack.c.l.b16 %v220
    %v769 = vunpack.c.l.b16 %v221
    %v770 = vunpack.c.l.b16 %v222
    %v771 = vunpack.c.l.b16 %v223
    %v772 = vunpack.c.l.b16 %v224
    %v773 = vunpack.c.l.b16 %v225
    %v774 = vunpack.c.l.b16 %v226
    %v775 = vunpack.c.l.b16 %v227
    %v776 = vunpack.c.l.b16 %v228
    %v777 = vunpack.c.l.b16 %v229
    %v778 = vunpack.c.l.b16 %v230
    %v779 = vunpack.c.l.b16 %v231
    %v780 = vunpack.c.l.b16 %v232
    %v781 = vunpack.c.l.b16 %v233
    %v782 = vunpack.c.l.b16 %v234
    %v783 = vpack.c.b16 %v768, %v767
    %v784 = vpack.c.b16 %v770, %v769
    %v785 = vpack.c.b16 %v772, %v771
    %v786 = vpack.c.b16 %v774, %v773
    %v787 = vpack.c.b16 %v776, %v775
    %v788 = vpack.c.b16 %v778, %v777
    %v789 = vpack.c.b16 %v780, %v779
    %v790 = vpack.c.b16 %v782, %v781
    %799 = vmatprep.subr.bf16.mxu0 0
    %800 = vmatpush1.bf16.msra.mxu0 %v790
    %801 = vmatprep.subr.bf16.mxu0 0
    %802 = vmatpush1.bf16.msra.mxu0 %v789
    %803 = vmatprep.subr.bf16.mxu0 0
    %804 = vmatpush1.bf16.msra.mxu0 %v788
    %805 = vmatprep.subr.bf16.mxu0 0
    %806 = vmatpush1.bf16.msra.mxu0 %v787
    %807 = vmatprep.subr.bf16.mxu0 0
    %808 = vmatpush1.bf16.msra.mxu0 %v786
    %809 = vmatprep.subr.bf16.mxu0 0
    %810 = vmatpush1.bf16.msra.mxu0 %v785
    %811 = vmatprep.subr.bf16.mxu0 0
    %812 = vmatpush1.bf16.msra.mxu0 %v784
    %813 = vmatprep.subr.bf16.mxu0 0
    %814 = vmatpush1.bf16.msra.mxu0 %v783
    %815 = vmatprep.subr.bf16.mxu0 0
    %816 = vmatpush2.bf16.msra.mxu0 0
    %817 = vmatprep.subr.bf16.mxu0 0
    %818 = vmatpush2.bf16.msra.mxu0 0
    %819 = vmatprep.subr.bf16.mxu0 0
    %820 = vmatpush2.bf16.msra.mxu0 0
    %821 = vmatprep.subr.bf16.mxu0 0
    %822 = vmatpush2.bf16.msra.mxu0 0
    %823 = vmatprep.subr.bf16.mxu0 0
    %824 = vmatpush2.bf16.msra.mxu0 0
    %825 = vmatprep.subr.bf16.mxu0 0
    %826 = vmatpush2.bf16.msra.mxu0 0
    %827 = vmatprep.subr.bf16.mxu0 0
    %828 = vmatpush2.bf16.msra.mxu0 0
    %829 = vmatprep.subr.bf16.mxu0 0
    %830 = vmatpush2.bf16.msra.mxu0 0
    %831 = vmatprep.mubr.bf16.mxu0 0
    %832 = vmatmul.mubr.bf16.gmra.mxu0 %v579
    %v833 = vpop.f32.mrf.mxu0
    %v834 = vadd.f32 0.0, %v833
    %v835 = vpop.f32.mrf.mxu0
    %v836 = vpop.f32.mrf.mxu0
    %v837 = vadd.f32 0.0, %v836
    %v838 = vpop.f32.mrf.mxu0
    %839 = vmatprep.mubr.bf16.mxu0 0
    %840 = vmatmul.mubr.bf16.gmra.mxu0 %v580
    %v841 = vpop.f32.mrf.mxu0
    %v842 = vadd.f32 0.0, %v841
    %v843 = vpop.f32.mrf.mxu0
    %v844 = vpop.f32.mrf.mxu0
    %v845 = vadd.f32 0.0, %v844
    %v846 = vpop.f32.mrf.mxu0
    %847 = vmatprep.mubr.bf16.mxu0 0
    %848 = vmatmul.mubr.bf16.gmra.mxu0 %v581
    %v849 = vpop.f32.mrf.mxu0
    %v850 = vadd.f32 0.0, %v849
    %v851 = vpop.f32.mrf.mxu0
    %v852 = vpop.f32.mrf.mxu0
    %v853 = vadd.f32 0.0, %v852
    %v854 = vpop.f32.mrf.mxu0
    %855 = vmatprep.mubr.bf16.mxu0 0
    %856 = vmatmul.mubr.bf16.gmra.mxu0 %v582
    %v857 = vpop.f32.mrf.mxu0
    %v858 = vadd.f32 0.0, %v857
    %v859 = vpop.f32.mrf.mxu0
    %v860 = vpop.f32.mrf.mxu0
    %v861 = vadd.f32 0.0, %v860
    %v862 = vpop.f32.mrf.mxu0
    %863 = vmatprep.mubr.bf16.mxu0 0
    %864 = vmatmul.mubr.bf16.gmra.mxu0 %v583
    %v865 = vpop.f32.mrf.mxu0
    %v866 = vadd.f32 0.0, %v865
    %v867 = vpop.f32.mrf.mxu0
    %v868 = vpop.f32.mrf.mxu0
    %v869 = vadd.f32 0.0, %v868
    %v870 = vpop.f32.mrf.mxu0
    %871 = vmatprep.mubr.bf16.mxu0 0
    %872 = vmatmul.mubr.bf16.gmra.mxu0 %v584
    %v873 = vpop.f32.mrf.mxu0
    %v874 = vadd.f32 0.0, %v873
    %v875 = vpop.f32.mrf.mxu0
    %v876 = vpop.f32.mrf.mxu0
    %v877 = vadd.f32 0.0, %v876
    %v878 = vpop.f32.mrf.mxu0
    %879 = vmatprep.mubr.bf16.mxu0 0
    %880 = vmatmul.mubr.bf16.gmra.mxu0 %v585
    %v881 = vpop.f32.mrf.mxu0
    %v882 = vadd.f32 0.0, %v881
    %v883 = vpop.f32.mrf.mxu0
    %v884 = vpop.f32.mrf.mxu0
    %v885 = vadd.f32 0.0, %v884
    %v886 = vpop.f32.mrf.mxu0
    %887 = vmatprep.mubr.bf16.mxu0 0
    %888 = vmatmul.mubr.bf16.gmra.mxu0 %v586
    %v889 = vpop.f32.mrf.mxu0
    %v890 = vadd.f32 0.0, %v889
    %v891 = vpop.f32.mrf.mxu0
    %v892 = vpop.f32.mrf.mxu0
    %v893 = vadd.f32 0.0, %v892
    %v894 = vpop.f32.mrf.mxu0
    %895 = vmatprep.mubr.bf16.mxu0 0
    %896 = vmatmul.mubr.bf16.gmra.mxu0 %v587
    %v897 = vpop.f32.mrf.mxu0
    %v898 = vadd.f32 0.0, %v897
    %v899 = vpop.f32.mrf.mxu0
    %v900 = vpop.f32.mrf.mxu0
    %v901 = vadd.f32 0.0, %v900
    %v902 = vpop.f32.mrf.mxu0
    %903 = vmatprep.mubr.bf16.mxu0 0
    %904 = vmatmul.mubr.bf16.gmra.mxu0 %v588
    %v905 = vpop.f32.mrf.mxu0
    %v906 = vadd.f32 0.0, %v905
    %v907 = vpop.f32.mrf.mxu0
    %v908 = vpop.f32.mrf.mxu0
    %v909 = vadd.f32 0.0, %v908
    %v910 = vpop.f32.mrf.mxu0
    %911 = vmatprep.mubr.bf16.mxu0 0
    %912 = vmatmul.mubr.bf16.gmra.mxu0 %v589
    %v913 = vpop.f32.mrf.mxu0
    %v914 = vadd.f32 0.0, %v913
    %v915 = vpop.f32.mrf.mxu0
    %v916 = vpop.f32.mrf.mxu0
    %v917 = vadd.f32 0.0, %v916
    %v918 = vpop.f32.mrf.mxu0
    %919 = vmatprep.mubr.bf16.mxu0 0
    %920 = vmatmul.mubr.bf16.gmra.mxu0 %v590
    %v921 = vpop.f32.mrf.mxu0
    %v922 = vadd.f32 0.0, %v921
    %v923 = vpop.f32.mrf.mxu0
    %v924 = vpop.f32.mrf.mxu0
    %v925 = vadd.f32 0.0, %v924
    %v926 = vpop.f32.mrf.mxu0
    %927 = vmatprep.mubr.bf16.mxu0 0
    %928 = vmatmul.mubr.bf16.gmra.mxu0 %v591
    %v929 = vpop.f32.mrf.mxu0
    %v930 = vadd.f32 0.0, %v929
    %v931 = vpop.f32.mrf.mxu0
    %v932 = vpop.f32.mrf.mxu0
    %v933 = vadd.f32 0.0, %v932
    %v934 = vpop.f32.mrf.mxu0
    %935 = vmatprep.mubr.bf16.mxu0 0
    %936 = vmatmul.mubr.bf16.gmra.mxu0 %v592
    %v937 = vpop.f32.mrf.mxu0
    %v938 = vadd.f32 0.0, %v937
    %v939 = vpop.f32.mrf.mxu0
    %v940 = vpop.f32.mrf.mxu0
    %v941 = vadd.f32 0.0, %v940
    %v942 = vpop.f32.mrf.mxu0
    %943 = vmatprep.mubr.bf16.mxu0 0
    %944 = vmatmul.mubr.bf16.gmra.mxu0 %v593
    %v945 = vpop.f32.mrf.mxu0
    %v946 = vadd.f32 0.0, %v945
    %v947 = vpop.f32.mrf.mxu0
    %v948 = vpop.f32.mrf.mxu0
    %v949 = vadd.f32 0.0, %v948
    %v950 = vpop.f32.mrf.mxu0
    %951 = vmatprep.mubr.bf16.mxu0 0
    %952 = vmatmul.mubr.bf16.gmra.mxu0 %v594
    %v953 = vpop.f32.mrf.mxu0
    %v954 = vadd.f32 0.0, %v953
    %v955 = vpop.f32.mrf.mxu0
    %v956 = vpop.f32.mrf.mxu0
    %v957 = vadd.f32 0.0, %v956
    %v958 = vpop.f32.mrf.mxu0
    %959 = vmatprep.mubr.bf16.mxu0 0
    %960 = vmatmul.mubr.bf16.gmra.mxu0 %v595
    %v961 = vpop.f32.mrf.mxu0
    %v962 = vadd.f32 0.0, %v961
    %v963 = vpop.f32.mrf.mxu0
    %v964 = vpop.f32.mrf.mxu0
    %v965 = vadd.f32 0.0, %v964
    %v966 = vpop.f32.mrf.mxu0
    %967 = vmatprep.mubr.bf16.mxu0 0
    %968 = vmatmul.mubr.bf16.gmra.mxu0 %v596
    %v969 = vpop.f32.mrf.mxu0
    %v970 = vadd.f32 0.0, %v969
    %v971 = vpop.f32.mrf.mxu0
    %v972 = vpop.f32.mrf.mxu0
    %v973 = vadd.f32 0.0, %v972
    %v974 = vpop.f32.mrf.mxu0
    %975 = vmatprep.mubr.bf16.mxu0 0
    %976 = vmatmul.mubr.bf16.gmra.mxu0 %v597
    %v977 = vpop.f32.mrf.mxu0
    %v978 = vadd.f32 0.0, %v977
    %v979 = vpop.f32.mrf.mxu0
    %v980 = vpop.f32.mrf.mxu0
    %v981 = vadd.f32 0.0, %v980
    %v982 = vpop.f32.mrf.mxu0
    %983 = vmatprep.mubr.bf16.mxu0 0
    %984 = vmatmul.mubr.bf16.gmra.mxu0 %v598
    %v985 = vpop.f32.mrf.mxu0
    %v986 = vadd.f32 0.0, %v985
    %v987 = vpop.f32.mrf.mxu0
    %v988 = vpop.f32.mrf.mxu0
    %v989 = vadd.f32 0.0, %v988
    %v990 = vpop.f32.mrf.mxu0
    %991 = vmatprep.mubr.bf16.mxu0 0
    %992 = vmatmul.mubr.bf16.gmra.mxu0 %v599
    %v993 = vpop.f32.mrf.mxu0
    %v994 = vadd.f32 0.0, %v993
    %v995 = vpop.f32.mrf.mxu0
    %v996 = vpop.f32.mrf.mxu0
    %v997 = vadd.f32 0.0, %v996
    %v998 = vpop.f32.mrf.mxu0
    %999 = vmatprep.mubr.bf16.mxu0 0
    %1000 = vmatmul.mubr.bf16.gmra.mxu0 %v600
    %v1001 = vpop.f32.mrf.mxu0
    %v1002 = vadd.f32 0.0, %v1001
    %v1003 = vpop.f32.mrf.mxu0
    %v1004 = vpop.f32.mrf.mxu0
    %v1005 = vadd.f32 0.0, %v1004
    %v1006 = vpop.f32.mrf.mxu0
    %1007 = vmatprep.mubr.bf16.mxu0 0
    %1008 = vmatmul.mubr.bf16.gmra.mxu0 %v601
    %v1009 = vpop.f32.mrf.mxu0
    %v1010 = vadd.f32 0.0, %v1009
    %v1011 = vpop.f32.mrf.mxu0
    %v1012 = vpop.f32.mrf.mxu0
    %v1013 = vadd.f32 0.0, %v1012
    %v1014 = vpop.f32.mrf.mxu0
    %1015 = vmatprep.mubr.bf16.mxu0 0
    %1016 = vmatmul.mubr.bf16.gmra.mxu0 %v602
    %v1017 = vpop.f32.mrf.mxu0
    %v1018 = vadd.f32 0.0, %v1017
    %v1019 = vpop.f32.mrf.mxu0
    %v1020 = vpop.f32.mrf.mxu0
    %v1021 = vadd.f32 0.0, %v1020
    %v1022 = vpop.f32.mrf.mxu0
    %1023 = vmatprep.mubr.bf16.mxu0 0
    %1024 = vmatmul.mubr.bf16.gmra.mxu0 %v603
    %v1025 = vpop.f32.mrf.mxu0
    %v1026 = vadd.f32 0.0, %v1025
    %v1027 = vpop.f32.mrf.mxu0
    %v1028 = vpop.f32.mrf.mxu0
    %v1029 = vadd.f32 0.0, %v1028
    %v1030 = vpop.f32.mrf.mxu0
    %1031 = vmatprep.mubr.bf16.mxu0 0
    %1032 = vmatmul.mubr.bf16.gmra.mxu0 %v604
    %v1033 = vpop.f32.mrf.mxu0
    %v1034 = vadd.f32 0.0, %v1033
    %v1035 = vpop.f32.mrf.mxu0
    %v1036 = vpop.f32.mrf.mxu0
    %v1037 = vadd.f32 0.0, %v1036
    %v1038 = vpop.f32.mrf.mxu0
    %1039 = vmatprep.mubr.bf16.mxu0 0
    %1040 = vmatmul.mubr.bf16.gmra.mxu0 %v605
    %v1041 = vpop.f32.mrf.mxu0
    %v1042 = vadd.f32 0.0, %v1041
    %v1043 = vpop.f32.mrf.mxu0
    %v1044 = vpop.f32.mrf.mxu0
    %v1045 = vadd.f32 0.0, %v1044
    %v1046 = vpop.f32.mrf.mxu0
    %1047 = vmatprep.mubr.bf16.mxu0 0
    %1048 = vmatmul.mubr.bf16.gmra.mxu0 %v606
    %v1049 = vpop.f32.mrf.mxu0
    %v1050 = vadd.f32 0.0, %v1049
    %v1051 = vpop.f32.mrf.mxu0
    %v1052 = vpop.f32.mrf.mxu0
    %v1053 = vadd.f32 0.0, %v1052
    %v1054 = vpop.f32.mrf.mxu0
    %1055 = vmatprep.mubr.bf16.mxu0 0
    %1056 = vmatmul.mubr.bf16.gmra.mxu0 %v607
    %v1057 = vpop.f32.mrf.mxu0
    %v1058 = vadd.f32 0.0, %v1057
    %v1059 = vpop.f32.mrf.mxu0
    %v1060 = vpop.f32.mrf.mxu0
    %v1061 = vadd.f32 0.0, %v1060
    %v1062 = vpop.f32.mrf.mxu0
    %1063 = vmatprep.mubr.bf16.mxu0 0
    %1064 = vmatmul.mubr.bf16.gmra.mxu0 %v608
    %v1065 = vpop.f32.mrf.mxu0
    %v1066 = vadd.f32 0.0, %v1065
    %v1067 = vpop.f32.mrf.mxu0
    %v1068 = vpop.f32.mrf.mxu0
    %v1069 = vadd.f32 0.0, %v1068
    %v1070 = vpop.f32.mrf.mxu0
    %1071 = vmatprep.mubr.bf16.mxu0 0
    %1072 = vmatmul.mubr.bf16.gmra.mxu0 %v609
    %v1073 = vpop.f32.mrf.mxu0
    %v1074 = vadd.f32 0.0, %v1073
    %v1075 = vpop.f32.mrf.mxu0
    %v1076 = vpop.f32.mrf.mxu0
    %v1077 = vadd.f32 0.0, %v1076
    %v1078 = vpop.f32.mrf.mxu0
    %1079 = vmatprep.mubr.bf16.mxu0 0
    %1080 = vmatmul.mubr.bf16.gmra.mxu0 %v610
    %v1081 = vpop.f32.mrf.mxu0
    %v1082 = vadd.f32 0.0, %v1081
    %v1083 = vpop.f32.mrf.mxu0
    %v1084 = vpop.f32.mrf.mxu0
    %v1085 = vadd.f32 0.0, %v1084
    %v1086 = vpop.f32.mrf.mxu0
    %1087 = vmatprep.mubr.bf16.mxu0 0
    %1088 = vmatmul.mubr.bf16.gmra.mxu0 %v611
    %v1089 = vpop.f32.mrf.mxu0
    %v1090 = vadd.f32 0.0, %v1089
    %v1091 = vpop.f32.mrf.mxu0
    %v1092 = vpop.f32.mrf.mxu0
    %v1093 = vadd.f32 0.0, %v1092
    %v1094 = vpop.f32.mrf.mxu0
    %1095 = vmatprep.mubr.bf16.mxu0 0
    %1096 = vmatmul.mubr.bf16.gmra.mxu0 %v612
    %v1097 = vpop.f32.mrf.mxu0
    %v1098 = vadd.f32 0.0, %v1097
    %v1099 = vpop.f32.mrf.mxu0
    %v1100 = vpop.f32.mrf.mxu0
    %v1101 = vadd.f32 0.0, %v1100
    %v1102 = vpop.f32.mrf.mxu0
    %1103 = vmatprep.mubr.bf16.mxu0 0
    %1104 = vmatmul.mubr.bf16.gmra.mxu0 %v613
    %v1105 = vpop.f32.mrf.mxu0
    %v1106 = vadd.f32 0.0, %v1105
    %v1107 = vpop.f32.mrf.mxu0
    %v1108 = vpop.f32.mrf.mxu0
    %v1109 = vadd.f32 0.0, %v1108
    %v1110 = vpop.f32.mrf.mxu0
    %1111 = vmatprep.mubr.bf16.mxu0 0
    %1112 = vmatmul.mubr.bf16.gmra.mxu0 %v614
    %v1113 = vpop.f32.mrf.mxu0
    %v1114 = vadd.f32 0.0, %v1113
    %v1115 = vpop.f32.mrf.mxu0
    %v1116 = vpop.f32.mrf.mxu0
    %v1117 = vadd.f32 0.0, %v1116
    %v1118 = vpop.f32.mrf.mxu0
    %1119 = vmatprep.mubr.bf16.mxu0 0
    %1120 = vmatmul.mubr.bf16.gmra.mxu0 %v615
    %v1121 = vpop.f32.mrf.mxu0
    %v1122 = vadd.f32 0.0, %v1121
    %v1123 = vpop.f32.mrf.mxu0
    %v1124 = vpop.f32.mrf.mxu0
    %v1125 = vadd.f32 0.0, %v1124
    %v1126 = vpop.f32.mrf.mxu0
    %1127 = vmatprep.mubr.bf16.mxu0 0
    %1128 = vmatmul.mubr.bf16.gmra.mxu0 %v616
    %v1129 = vpop.f32.mrf.mxu0
    %v1130 = vadd.f32 0.0, %v1129
    %v1131 = vpop.f32.mrf.mxu0
    %v1132 = vpop.f32.mrf.mxu0
    %v1133 = vadd.f32 0.0, %v1132
    %v1134 = vpop.f32.mrf.mxu0
    %1135 = vmatprep.mubr.bf16.mxu0 0
    %1136 = vmatmul.mubr.bf16.gmra.mxu0 %v617
    %v1137 = vpop.f32.mrf.mxu0
    %v1138 = vadd.f32 0.0, %v1137
    %v1139 = vpop.f32.mrf.mxu0
    %v1140 = vpop.f32.mrf.mxu0
    %v1141 = vadd.f32 0.0, %v1140
    %v1142 = vpop.f32.mrf.mxu0
    %1143 = vmatprep.mubr.bf16.mxu0 0
    %1144 = vmatmul.mubr.bf16.gmra.mxu0 %v618
    %v1145 = vpop.f32.mrf.mxu0
    %v1146 = vadd.f32 0.0, %v1145
    %v1147 = vpop.f32.mrf.mxu0
    %v1148 = vpop.f32.mrf.mxu0
    %v1149 = vadd.f32 0.0, %v1148
    %v1150 = vpop.f32.mrf.mxu0
    %1151 = vmatprep.mubr.bf16.mxu0 0
    %1152 = vmatmul.mubr.bf16.gmra.mxu0 %v619
    %v1153 = vpop.f32.mrf.mxu0
    %v1154 = vadd.f32 0.0, %v1153
    %v1155 = vpop.f32.mrf.mxu0
    %v1156 = vpop.f32.mrf.mxu0
    %v1157 = vadd.f32 0.0, %v1156
    %v1158 = vpop.f32.mrf.mxu0
    %1159 = vmatprep.mubr.bf16.mxu0 0
    %1160 = vmatmul.mubr.bf16.gmra.mxu0 %v620
    %v1161 = vpop.f32.mrf.mxu0
    %v1162 = vadd.f32 0.0, %v1161
    %v1163 = vpop.f32.mrf.mxu0
    %v1164 = vpop.f32.mrf.mxu0
    %v1165 = vadd.f32 0.0, %v1164
    %v1166 = vpop.f32.mrf.mxu0
    %1167 = vmatprep.mubr.bf16.mxu0 0
    %1168 = vmatmul.mubr.bf16.gmra.mxu0 %v621
    %v1169 = vpop.f32.mrf.mxu0
    %v1170 = vadd.f32 0.0, %v1169
    %v1171 = vpop.f32.mrf.mxu0
    %v1172 = vpop.f32.mrf.mxu0
    %v1173 = vadd.f32 0.0, %v1172
    %v1174 = vpop.f32.mrf.mxu0
    %1175 = vmatprep.mubr.bf16.mxu0 0
    %1176 = vmatmul.mubr.bf16.gmra.mxu0 %v622
    %v1177 = vpop.f32.mrf.mxu0
    %v1178 = vadd.f32 0.0, %v1177
    %v1179 = vpop.f32.mrf.mxu0
    %v1180 = vpop.f32.mrf.mxu0
    %v1181 = vadd.f32 0.0, %v1180
    %v1182 = vpop.f32.mrf.mxu0
    %1183 = vmatprep.mubr.bf16.mxu0 0
    %1184 = vmatmul.mubr.bf16.gmra.mxu0 %v623
    %v1185 = vpop.f32.mrf.mxu0
    %v1186 = vadd.f32 0.0, %v1185
    %v1187 = vpop.f32.mrf.mxu0
    %v1188 = vpop.f32.mrf.mxu0
    %v1189 = vadd.f32 0.0, %v1188
    %v1190 = vpop.f32.mrf.mxu0
    %1191 = vmatprep.mubr.bf16.mxu0 0
    %1192 = vmatmul.mubr.bf16.gmra.mxu0 %v624
    %v1193 = vpop.f32.mrf.mxu0
    %v1194 = vadd.f32 0.0, %v1193
    %v1195 = vpop.f32.mrf.mxu0
    %v1196 = vpop.f32.mrf.mxu0
    %v1197 = vadd.f32 0.0, %v1196
    %v1198 = vpop.f32.mrf.mxu0
    %1199 = vmatprep.mubr.bf16.mxu0 0
    %1200 = vmatmul.mubr.bf16.gmra.mxu0 %v625
    %v1201 = vpop.f32.mrf.mxu0
    %v1202 = vadd.f32 0.0, %v1201
    %v1203 = vpop.f32.mrf.mxu0
    %v1204 = vpop.f32.mrf.mxu0
    %v1205 = vadd.f32 0.0, %v1204
    %v1206 = vpop.f32.mrf.mxu0
    %1207 = vmatprep.mubr.bf16.mxu0 0
    %1208 = vmatmul.mubr.bf16.gmra.mxu0 %v626
    %v1209 = vpop.f32.mrf.mxu0
    %v1210 = vadd.f32 0.0, %v1209
    %v1211 = vpop.f32.mrf.mxu0
    %v1212 = vpop.f32.mrf.mxu0
    %v1213 = vadd.f32 0.0, %v1212
    %v1214 = vpop.f32.mrf.mxu0
    %1215 = vmatprep.mubr.bf16.mxu0 0
    %1216 = vmatmul.mubr.bf16.gmra.mxu0 %v627
    %v1217 = vpop.f32.mrf.mxu0
    %v1218 = vadd.f32 0.0, %v1217
    %v1219 = vpop.f32.mrf.mxu0
    %v1220 = vpop.f32.mrf.mxu0
    %v1221 = vadd.f32 0.0, %v1220
    %v1222 = vpop.f32.mrf.mxu0
    %1223 = vmatprep.mubr.bf16.mxu0 0
    %1224 = vmatmul.mubr.bf16.gmra.mxu0 %v628
    %v1225 = vpop.f32.mrf.mxu0
    %v1226 = vadd.f32 0.0, %v1225
    %v1227 = vpop.f32.mrf.mxu0
    %v1228 = vpop.f32.mrf.mxu0
    %v1229 = vadd.f32 0.0, %v1228
    %v1230 = vpop.f32.mrf.mxu0
    %1231 = vmatprep.mubr.bf16.mxu0 0
    %1232 = vmatmul.mubr.bf16.gmra.mxu0 %v629
    %v1233 = vpop.f32.mrf.mxu0
    %v1234 = vadd.f32 0.0, %v1233
    %v1235 = vpop.f32.mrf.mxu0
    %v1236 = vpop.f32.mrf.mxu0
    %v1237 = vadd.f32 0.0, %v1236
    %v1238 = vpop.f32.mrf.mxu0
    %1239 = vmatprep.mubr.bf16.mxu0 0
    %1240 = vmatmul.mubr.bf16.gmra.mxu0 %v630
    %v1241 = vpop.f32.mrf.mxu0
    %v1242 = vadd.f32 0.0, %v1241
    %v1243 = vpop.f32.mrf.mxu0
    %v1244 = vpop.f32.mrf.mxu0
    %v1245 = vadd.f32 0.0, %v1244
    %v1246 = vpop.f32.mrf.mxu0
    %1247 = vmatprep.mubr.bf16.mxu0 0
    %1248 = vmatmul.mubr.bf16.gmra.mxu0 %v631
    %v1249 = vpop.f32.mrf.mxu0
    %v1250 = vadd.f32 0.0, %v1249
    %v1251 = vpop.f32.mrf.mxu0
    %v1252 = vpop.f32.mrf.mxu0
    %v1253 = vadd.f32 0.0, %v1252
    %v1254 = vpop.f32.mrf.mxu0
    %1255 = vmatprep.mubr.bf16.mxu0 0
    %1256 = vmatmul.mubr.bf16.gmra.mxu0 %v632
    %v1257 = vpop.f32.mrf.mxu0
    %v1258 = vadd.f32 0.0, %v1257
    %v1259 = vpop.f32.mrf.mxu0
    %v1260 = vpop.f32.mrf.mxu0
    %v1261 = vadd.f32 0.0, %v1260
    %v1262 = vpop.f32.mrf.mxu0
    %1263 = vmatprep.mubr.bf16.mxu0 0
    %1264 = vmatmul.mubr.bf16.gmra.mxu0 %v633
    %v1265 = vpop.f32.mrf.mxu0
    %v1266 = vadd.f32 0.0, %v1265
    %v1267 = vpop.f32.mrf.mxu0
    %v1268 = vpop.f32.mrf.mxu0
    %v1269 = vadd.f32 0.0, %v1268
    %v1270 = vpop.f32.mrf.mxu0
    %1271 = vmatprep.mubr.bf16.mxu0 0
    %1272 = vmatmul.mubr.bf16.gmra.mxu0 %v634
    %v1273 = vpop.f32.mrf.mxu0
    %v1274 = vadd.f32 0.0, %v1273
    %v1275 = vpop.f32.mrf.mxu0
    %v1276 = vpop.f32.mrf.mxu0
    %v1277 = vadd.f32 0.0, %v1276
    %v1278 = vpop.f32.mrf.mxu0
    %1279 = vmatprep.mubr.bf16.mxu0 0
    %1280 = vmatmul.mubr.bf16.gmra.mxu0 %v635
    %v1281 = vpop.f32.mrf.mxu0
    %v1282 = vadd.f32 0.0, %v1281
    %v1283 = vpop.f32.mrf.mxu0
    %v1284 = vpop.f32.mrf.mxu0
    %v1285 = vadd.f32 0.0, %v1284
    %v1286 = vpop.f32.mrf.mxu0
    %1287 = vmatprep.mubr.bf16.mxu0 0
    %1288 = vmatmul.mubr.bf16.gmra.mxu0 %v636
    %v1289 = vpop.f32.mrf.mxu0
    %v1290 = vadd.f32 0.0, %v1289
    %v1291 = vpop.f32.mrf.mxu0
    %v1292 = vpop.f32.mrf.mxu0
    %v1293 = vadd.f32 0.0, %v1292
    %v1294 = vpop.f32.mrf.mxu0
    %1295 = vmatprep.mubr.bf16.mxu0 0
    %1296 = vmatmul.mubr.bf16.gmra.mxu0 %v637
    %v1297 = vpop.f32.mrf.mxu0
    %v1298 = vadd.f32 0.0, %v1297
    %v1299 = vpop.f32.mrf.mxu0
    %v1300 = vpop.f32.mrf.mxu0
    %v1301 = vadd.f32 0.0, %v1300
    %v1302 = vpop.f32.mrf.mxu0
    %1303 = vmatprep.mubr.bf16.mxu0 0
    %1304 = vmatmul.mubr.bf16.gmra.mxu0 %v638
    %v1305 = vpop.f32.mrf.mxu0
    %v1306 = vadd.f32 0.0, %v1305
    %v1307 = vpop.f32.mrf.mxu0
    %v1308 = vpop.f32.mrf.mxu0
    %v1309 = vadd.f32 0.0, %v1308
    %v1310 = vpop.f32.mrf.mxu0
    %1311 = vmatprep.mubr.bf16.mxu0 0
    %1312 = vmatmul.mubr.bf16.gmra.mxu0 %v639
    %v1313 = vpop.f32.mrf.mxu0
    %v1314 = vadd.f32 0.0, %v1313
    %v1315 = vpop.f32.mrf.mxu0
    %v1316 = vpop.f32.mrf.mxu0
    %v1317 = vadd.f32 0.0, %v1316
    %v1318 = vpop.f32.mrf.mxu0
    %1319 = vmatprep.mubr.bf16.mxu0 0
    %1320 = vmatmul.mubr.bf16.gmra.mxu0 %v640
    %v1321 = vpop.f32.mrf.mxu0
    %v1322 = vadd.f32 0.0, %v1321
    %v1323 = vpop.f32.mrf.mxu0
    %v1324 = vpop.f32.mrf.mxu0
    %v1325 = vadd.f32 0.0, %v1324
    %v1326 = vpop.f32.mrf.mxu0
    %1327 = vmatprep.mubr.bf16.mxu0 0
    %1328 = vmatmul.mubr.bf16.gmra.mxu0 %v641
    %v1329 = vpop.f32.mrf.mxu0
    %v1330 = vadd.f32 0.0, %v1329
    %v1331 = vpop.f32.mrf.mxu0
    %v1332 = vpop.f32.mrf.mxu0
    %v1333 = vadd.f32 0.0, %v1332
    %v1334 = vpop.f32.mrf.mxu0
    %1335 = vmatprep.mubr.bf16.mxu0 0
    %1336 = vmatmul.mubr.bf16.gmra.mxu0 %v642
    %v1337 = vpop.f32.mrf.mxu0
    %v1338 = vadd.f32 0.0, %v1337
    %v1339 = vpop.f32.mrf.mxu0
    %v1340 = vpop.f32.mrf.mxu0
    %v1341 = vadd.f32 0.0, %v1340
    %v1342 = vpop.f32.mrf.mxu0
    %1343 = vmatprep.mubr.bf16.mxu0 0
    %1344 = vmatmul.mubr.bf16.gmra.mxu0 %v643
    %v1345 = vpop.f32.mrf.mxu0
    %v1346 = vadd.f32 0.0, %v1345
    %v1347 = vpop.f32.mrf.mxu0
    %v1348 = vpop.f32.mrf.mxu0
    %v1349 = vadd.f32 0.0, %v1348
    %v1350 = vpop.f32.mrf.mxu0
    %1351 = vmatprep.mubr.bf16.mxu0 0
    %1352 = vmatmul.mubr.bf16.gmra.mxu0 %v644
    %v1353 = vpop.f32.mrf.mxu0
    %v1354 = vadd.f32 0.0, %v1353
    %v1355 = vpop.f32.mrf.mxu0
    %v1356 = vpop.f32.mrf.mxu0
    %v1357 = vadd.f32 0.0, %v1356
    %v1358 = vpop.f32.mrf.mxu0
    %1359 = vmatprep.mubr.bf16.mxu0 0
    %1360 = vmatmul.mubr.bf16.gmra.mxu0 %v645
    %v1361 = vpop.f32.mrf.mxu0
    %v1362 = vadd.f32 0.0, %v1361
    %v1363 = vpop.f32.mrf.mxu0
    %v1364 = vpop.f32.mrf.mxu0
    %v1365 = vadd.f32 0.0, %v1364
    %v1366 = vpop.f32.mrf.mxu0
    %1367 = vmatprep.mubr.bf16.mxu0 0
    %1368 = vmatmul.mubr.bf16.gmra.mxu0 %v646
    %v1369 = vpop.f32.mrf.mxu0
    %v1370 = vadd.f32 0.0, %v1369
    %v1371 = vpop.f32.mrf.mxu0
    %v1372 = vpop.f32.mrf.mxu0
    %v1373 = vadd.f32 0.0, %v1372
    %v1374 = vpop.f32.mrf.mxu0
    %1375 = vmatprep.mubr.bf16.mxu0 0
    %1376 = vmatmul.mubr.bf16.gmra.mxu0 %v647
    %v1377 = vpop.f32.mrf.mxu0
    %v1378 = vadd.f32 0.0, %v1377
    %v1379 = vpop.f32.mrf.mxu0
    %v1380 = vpop.f32.mrf.mxu0
    %v1381 = vadd.f32 0.0, %v1380
    %v1382 = vpop.f32.mrf.mxu0
    %1383 = vmatprep.mubr.bf16.mxu0 0
    %1384 = vmatmul.mubr.bf16.gmra.mxu0 %v648
    %v1385 = vpop.f32.mrf.mxu0
    %v1386 = vadd.f32 0.0, %v1385
    %v1387 = vpop.f32.mrf.mxu0
    %v1388 = vpop.f32.mrf.mxu0
    %v1389 = vadd.f32 0.0, %v1388
    %v1390 = vpop.f32.mrf.mxu0
    %1391 = vmatprep.mubr.bf16.mxu0 0
    %1392 = vmatmul.mubr.bf16.gmra.mxu0 %v649
    %v1393 = vpop.f32.mrf.mxu0
    %v1394 = vadd.f32 0.0, %v1393
    %v1395 = vpop.f32.mrf.mxu0
    %v1396 = vpop.f32.mrf.mxu0
    %v1397 = vadd.f32 0.0, %v1396
    %v1398 = vpop.f32.mrf.mxu0
    %1399 = vmatprep.mubr.bf16.mxu0 0
    %1400 = vmatmul.mubr.bf16.gmra.mxu0 %v650
    %v1401 = vpop.f32.mrf.mxu0
    %v1402 = vadd.f32 0.0, %v1401
    %v1403 = vpop.f32.mrf.mxu0
    %v1404 = vpop.f32.mrf.mxu0
    %v1405 = vadd.f32 0.0, %v1404
    %v1406 = vpop.f32.mrf.mxu0
    %1407 = vmatprep.mubr.bf16.mxu0 0
    %1408 = vmatmul.mubr.bf16.gmra.mxu0 %v651
    %v1409 = vpop.f32.mrf.mxu0
    %v1410 = vadd.f32 0.0, %v1409
    %v1411 = vpop.f32.mrf.mxu0
    %v1412 = vpop.f32.mrf.mxu0
    %v1413 = vadd.f32 0.0, %v1412
    %v1414 = vpop.f32.mrf.mxu0
    %1415 = vmatprep.mubr.bf16.mxu0 0
    %1416 = vmatmul.mubr.bf16.gmra.mxu0 %v652
    %v1417 = vpop.f32.mrf.mxu0
    %v1418 = vadd.f32 0.0, %v1417
    %v1419 = vpop.f32.mrf.mxu0
    %v1420 = vpop.f32.mrf.mxu0
    %v1421 = vadd.f32 0.0, %v1420
    %v1422 = vpop.f32.mrf.mxu0
    %1423 = vmatprep.mubr.bf16.mxu0 0
    %1424 = vmatmul.mubr.bf16.gmra.mxu0 %v653
    %v1425 = vpop.f32.mrf.mxu0
    %v1426 = vadd.f32 0.0, %v1425
    %v1427 = vpop.f32.mrf.mxu0
    %v1428 = vpop.f32.mrf.mxu0
    %v1429 = vadd.f32 0.0, %v1428
    %v1430 = vpop.f32.mrf.mxu0
    %1431 = vmatprep.mubr.bf16.mxu0 0
    %1432 = vmatmul.mubr.bf16.gmra.mxu0 %v654
    %v1433 = vpop.f32.mrf.mxu0
    %v1434 = vadd.f32 0.0, %v1433
    %v1435 = vpop.f32.mrf.mxu0
    %v1436 = vpop.f32.mrf.mxu0
    %v1437 = vadd.f32 0.0, %v1436
    %v1438 = vpop.f32.mrf.mxu0
    %1439 = vmatprep.mubr.bf16.mxu0 0
    %1440 = vmatmul.mubr.bf16.gmra.mxu0 %v655
    %v1441 = vpop.f32.mrf.mxu0
    %v1442 = vadd.f32 0.0, %v1441
    %v1443 = vpop.f32.mrf.mxu0
    %v1444 = vpop.f32.mrf.mxu0
    %v1445 = vadd.f32 0.0, %v1444
    %v1446 = vpop.f32.mrf.mxu0
    %1447 = vmatprep.mubr.bf16.mxu0 0
    %1448 = vmatmul.mubr.bf16.gmra.mxu0 %v656
    %v1449 = vpop.f32.mrf.mxu0
    %v1450 = vadd.f32 0.0, %v1449
    %v1451 = vpop.f32.mrf.mxu0
    %v1452 = vpop.f32.mrf.mxu0
    %v1453 = vadd.f32 0.0, %v1452
    %v1454 = vpop.f32.mrf.mxu0
    %1455 = vmatprep.mubr.bf16.mxu0 0
    %1456 = vmatmul.mubr.bf16.gmra.mxu0 %v657
    %v1457 = vpop.f32.mrf.mxu0
    %v1458 = vadd.f32 0.0, %v1457
    %v1459 = vpop.f32.mrf.mxu0
    %v1460 = vpop.f32.mrf.mxu0
    %v1461 = vadd.f32 0.0, %v1460
    %v1462 = vpop.f32.mrf.mxu0
    %1463 = vmatprep.mubr.bf16.mxu0 0
    %1464 = vmatmul.mubr.bf16.gmra.mxu0 %v658
    %v1465 = vpop.f32.mrf.mxu0
    %v1466 = vadd.f32 0.0, %v1465
    %v1467 = vpop.f32.mrf.mxu0
    %v1468 = vpop.f32.mrf.mxu0
    %v1469 = vadd.f32 0.0, %v1468
    %v1470 = vpop.f32.mrf.mxu0
    %1471 = vmatprep.mubr.bf16.mxu0 0
    %1472 = vmatmul.mubr.bf16.gmra.mxu0 %v659
    %v1473 = vpop.f32.mrf.mxu0
    %v1474 = vadd.f32 0.0, %v1473
    %v1475 = vpop.f32.mrf.mxu0
    %v1476 = vpop.f32.mrf.mxu0
    %v1477 = vadd.f32 0.0, %v1476
    %v1478 = vpop.f32.mrf.mxu0
    %1479 = vmatprep.mubr.bf16.mxu0 0
    %1480 = vmatmul.mubr.bf16.gmra.mxu0 %v660
    %v1481 = vpop.f32.mrf.mxu0
    %v1482 = vadd.f32 0.0, %v1481
    %v1483 = vpop.f32.mrf.mxu0
    %v1484 = vpop.f32.mrf.mxu0
    %v1485 = vadd.f32 0.0, %v1484
    %v1486 = vpop.f32.mrf.mxu0
    %1487 = vmatprep.mubr.bf16.mxu0 0
    %1488 = vmatmul.mubr.bf16.gmra.mxu0 %v661
    %v1489 = vpop.f32.mrf.mxu0
    %v1490 = vadd.f32 0.0, %v1489
    %v1491 = vpop.f32.mrf.mxu0
    %v1492 = vpop.f32.mrf.mxu0
    %v1493 = vadd.f32 0.0, %v1492
    %v1494 = vpop.f32.mrf.mxu0
    %1495 = vmatprep.mubr.bf16.mxu0 0
    %1496 = vmatmul.mubr.bf16.gmra.mxu0 %v662
    %v1497 = vpop.f32.mrf.mxu0
    %v1498 = vadd.f32 0.0, %v1497
    %v1499 = vpop.f32.mrf.mxu0
    %v1500 = vpop.f32.mrf.mxu0
    %v1501 = vadd.f32 0.0, %v1500
    %v1502 = vpop.f32.mrf.mxu0
    %1503 = vmatprep.mubr.bf16.mxu0 0
    %1504 = vmatmul.mubr.bf16.gmra.mxu0 %v663
    %v1505 = vpop.f32.mrf.mxu0
    %v1506 = vadd.f32 0.0, %v1505
    %v1507 = vpop.f32.mrf.mxu0
    %v1508 = vpop.f32.mrf.mxu0
    %v1509 = vadd.f32 0.0, %v1508
    %v1510 = vpop.f32.mrf.mxu0
    %1511 = vmatprep.mubr.bf16.mxu0 0
    %1512 = vmatmul.mubr.bf16.gmra.mxu0 %v664
    %v1513 = vpop.f32.mrf.mxu0
    %v1514 = vadd.f32 0.0, %v1513
    %v1515 = vpop.f32.mrf.mxu0
    %v1516 = vpop.f32.mrf.mxu0
    %v1517 = vadd.f32 0.0, %v1516
    %v1518 = vpop.f32.mrf.mxu0
    %1519 = vdwg.mxu0
    %v1520 = vadd.f32 %v834, %v837
    %v1521 = vadd.f32 %v1520, %v842
    %v1522 = vadd.f32 %v1521, %v845
    %v1523 = vadd.f32 %v1522, %v850
    %v1524 = vadd.f32 %v1523, %v853
    %v1525 = vadd.f32 %v1524, %v858
    %v1526 = vadd.f32 %v1525, %v861
    %v1527 = vadd.f32 %v1526, %v866
    %v1528 = vadd.f32 %v1527, %v869
    %v1529 = vadd.f32 %v1528, %v874
    %v1530 = vadd.f32 %v1529, %v877
    %v1531 = vadd.f32 %v1530, %v882
    %v1532 = vadd.f32 %v1531, %v885
    %v1533 = vadd.f32 %v1532, %v890
    %v1534 = vadd.f32 %v1533, %v893
    %v1535 = vadd.f32 %v1534, %v898
    %v1536 = vadd.f32 %v1535, %v901
    %v1537 = vadd.f32 %v1536, %v906
    %v1538 = vadd.f32 %v1537, %v909
    %v1539 = vadd.f32 %v1538, %v914
    %v1540 = vadd.f32 %v1539, %v917
    %v1541 = vadd.f32 %v1540, %v922
    %v1542 = vadd.f32 %v1541, %v925
    %v1543 = vadd.f32 %v1542, %v930
    %v1544 = vadd.f32 %v1543, %v933
    %v1545 = vadd.f32 %v1544, %v938
    %v1546 = vadd.f32 %v1545, %v941
    %v1547 = vadd.f32 %v1546, %v946
    %v1548 = vadd.f32 %v1547, %v949
    %v1549 = vadd.f32 %v1548, %v954
    %v1550 = vadd.f32 %v1549, %v957
    %v1551 = vadd.f32 %v1550, %v962
    %v1552 = vadd.f32 %v1551, %v965
    %v1553 = vadd.f32 %v1552, %v970
    %v1554 = vadd.f32 %v1553, %v973
    %v1555 = vadd.f32 %v1554, %v978
    %v1556 = vadd.f32 %v1555, %v981
    %v1557 = vadd.f32 %v1556, %v986
    %v1558 = vadd.f32 %v1557, %v989
    %v1559 = vadd.f32 %v1558, %v994
    %v1560 = vadd.f32 %v1559, %v997
    %v1561 = vadd.f32 %v1560, %v1002
    %v1562 = vadd.f32 %v1561, %v1005
    %v1563 = vadd.f32 %v1562, %v1010
    %v1564 = vadd.f32 %v1563, %v1013
    %v1565 = vadd.f32 %v1564, %v1018
    %v1566 = vadd.f32 %v1565, %v1021
    %v1567 = vadd.f32 %v1566, %v1026
    %v1568 = vadd.f32 %v1567, %v1029
    %v1569 = vadd.f32 %v1568, %v1034
    %v1570 = vadd.f32 %v1569, %v1037
    %v1571 = vadd.f32 %v1570, %v1042
    %v1572 = vadd.f32 %v1571, %v1045
    %v1573 = vadd.f32 %v1572, %v1050
    %v1574 = vadd.f32 %v1573, %v1053
    %v1575 = vadd.f32 %v1574, %v1058
    %v1576 = vadd.f32 %v1575, %v1061
    %v1577 = vadd.f32 %v1576, %v1066
    %v1578 = vadd.f32 %v1577, %v1069
    %v1579 = vadd.f32 %v1578, %v1074
    %v1580 = vadd.f32 %v1579, %v1077
    %v1581 = vadd.f32 %v1580, %v1082
    %v1582 = vadd.f32 %v1581, %v1085
    %v1583 = vadd.f32 %v1582, %v1090
    %v1584 = vadd.f32 %v1583, %v1093
    %v1585 = vadd.f32 %v1584, %v1098
    %v1586 = vadd.f32 %v1585, %v1101
    %v1587 = vadd.f32 %v1586, %v1106
    %v1588 = vadd.f32 %v1587, %v1109
    %v1589 = vadd.f32 %v1588, %v1114
    %v1590 = vadd.f32 %v1589, %v1117
    %v1591 = vadd.f32 %v1590, %v1122
    %v1592 = vadd.f32 %v1591, %v1125
    %v1593 = vadd.f32 %v1592, %v1130
    %v1594 = vadd.f32 %v1593, %v1133
    %v1595 = vadd.f32 %v1594, %v1138
    %v1596 = vadd.f32 %v1595, %v1141
    %v1597 = vadd.f32 %v1596, %v1146
    %v1598 = vadd.f32 %v1597, %v1149
    %v1599 = vadd.f32 %v1598, %v1154
    %v1600 = vadd.f32 %v1599, %v1157
    %v1601 = vadd.f32 %v1600, %v1162
    %v1602 = vadd.f32 %v1601, %v1165
    %v1603 = vadd.f32 %v1602, %v1170
    %v1604 = vadd.f32 %v1603, %v1173
    %v1605 = vadd.f32 %v1604, %v1178
    %v1606 = vadd.f32 %v1605, %v1181
    %v1607 = vadd.f32 %v1606, %v1186
    %v1608 = vadd.f32 %v1607, %v1189
    %v1609 = vadd.f32 %v1608, %v1194
    %v1610 = vadd.f32 %v1609, %v1197
    %v1611 = vadd.f32 %v1610, %v1202
    %v1612 = vadd.f32 %v1611, %v1205
    %v1613 = vadd.f32 %v1612, %v1210
    %v1614 = vadd.f32 %v1613, %v1213
    %v1615 = vadd.f32 %v1614, %v1218
    %v1616 = vadd.f32 %v1615, %v1221
    %v1617 = vadd.f32 %v1616, %v1226
    %v1618 = vadd.f32 %v1617, %v1229
    %v1619 = vadd.f32 %v1618, %v1234
    %v1620 = vadd.f32 %v1619, %v1237
    %v1621 = vadd.f32 %v1620, %v1242
    %v1622 = vadd.f32 %v1621, %v1245
    %v1623 = vadd.f32 %v1622, %v1250
    %v1624 = vadd.f32 %v1623, %v1253
    %v1625 = vadd.f32 %v1624, %v1258
    %v1626 = vadd.f32 %v1625, %v1261
    %v1627 = vadd.f32 %v1626, %v1266
    %v1628 = vadd.f32 %v1627, %v1269
    %v1629 = vadd.f32 %v1628, %v1274
    %v1630 = vadd.f32 %v1629, %v1277
    %v1631 = vadd.f32 %v1630, %v1282
    %v1632 = vadd.f32 %v1631, %v1285
    %v1633 = vadd.f32 %v1632, %v1290
    %v1634 = vadd.f32 %v1633, %v1293
    %v1635 = vadd.f32 %v1634, %v1298
    %v1636 = vadd.f32 %v1635, %v1301
    %v1637 = vadd.f32 %v1636, %v1306
    %v1638 = vadd.f32 %v1637, %v1309
    %v1639 = vadd.f32 %v1638, %v1314
    %v1640 = vadd.f32 %v1639, %v1317
    %v1641 = vadd.f32 %v1640, %v1322
    %v1642 = vadd.f32 %v1641, %v1325
    %v1643 = vadd.f32 %v1642, %v1330
    %v1644 = vadd.f32 %v1643, %v1333
    %v1645 = vadd.f32 %v1644, %v1338
    %v1646 = vadd.f32 %v1645, %v1341
    %v1647 = vadd.f32 %v1646, %v1346
    %v1648 = vadd.f32 %v1647, %v1349
    %v1649 = vadd.f32 %v1648, %v1354
    %v1650 = vadd.f32 %v1649, %v1357
    %v1651 = vadd.f32 %v1650, %v1362
    %v1652 = vadd.f32 %v1651, %v1365
    %v1653 = vadd.f32 %v1652, %v1370
    %v1654 = vadd.f32 %v1653, %v1373
    %v1655 = vadd.f32 %v1654, %v1378
    %v1656 = vadd.f32 %v1655, %v1381
    %v1657 = vadd.f32 %v1656, %v1386
    %v1658 = vadd.f32 %v1657, %v1389
    %v1659 = vadd.f32 %v1658, %v1394
    %v1660 = vadd.f32 %v1659, %v1397
    %v1661 = vadd.f32 %v1660, %v1402
    %v1662 = vadd.f32 %v1661, %v1405
    %v1663 = vadd.f32 %v1662, %v1410
    %v1664 = vadd.f32 %v1663, %v1413
    %v1665 = vadd.f32 %v1664, %v1418
    %v1666 = vadd.f32 %v1665, %v1421
    %v1667 = vadd.f32 %v1666, %v1426
    %v1668 = vadd.f32 %v1667, %v1429
    %v1669 = vadd.f32 %v1668, %v1434
    %v1670 = vadd.f32 %v1669, %v1437
    %v1671 = vadd.f32 %v1670, %v1442
    %v1672 = vadd.f32 %v1671, %v1445
    %v1673 = vadd.f32 %v1672, %v1450
    %v1674 = vadd.f32 %v1673, %v1453
    %v1675 = vadd.f32 %v1674, %v1458
    %v1676 = vadd.f32 %v1675, %v1461
    %v1677 = vadd.f32 %v1676, %v1466
    %v1678 = vadd.f32 %v1677, %v1469
    %v1679 = vadd.f32 %v1678, %v1474
    %v1680 = vadd.f32 %v1679, %v1477
    %v1681 = vadd.f32 %v1680, %v1482
    %v1682 = vadd.f32 %v1681, %v1485
    %v1683 = vadd.f32 %v1682, %v1490
    %v1684 = vadd.f32 %v1683, %v1493
    %v1685 = vadd.f32 %v1684, %v1498
    %v1686 = vadd.f32 %v1685, %v1501
    %v1687 = vadd.f32 %v1686, %v1506
    %v1688 = vadd.f32 %v1687, %v1509
    %v1689 = vadd.f32 %v1688, %v1514
    %v1690 = vadd.f32 %v1689, %v1517
    %v1691 = vrot.slane %v1690, 4
    %v1692 = vadd.f32 %v1690, %v1691
    %v1693 = vrot.slane %v1692, 2
    %v1694 = vadd.f32 %v1692, %v1693
    %v1695 = vrot.slane %v1694, 1
    %v1696 = vadd.f32 %v1694, %v1695
    %v1697 = vmul.f32 %v834, %v834
    %v1698 = vmul.f32 %v837, %v837
    %v1699 = vmul.f32 %v842, %v842
    %v1700 = vmul.f32 %v845, %v845
    %v1701 = vmul.f32 %v850, %v850
    %v1702 = vmul.f32 %v853, %v853
    %v1703 = vmul.f32 %v858, %v858
    %v1704 = vmul.f32 %v861, %v861
    %v1705 = vmul.f32 %v866, %v866
    %v1706 = vmul.f32 %v869, %v869
    %v1707 = vmul.f32 %v874, %v874
    %v1708 = vmul.f32 %v877, %v877
    %v1709 = vmul.f32 %v882, %v882
    %v1710 = vmul.f32 %v885, %v885
    %v1711 = vmul.f32 %v890, %v890
    %v1712 = vmul.f32 %v893, %v893
    %v1713 = vmul.f32 %v898, %v898
    %v1714 = vmul.f32 %v901, %v901
    %v1715 = vmul.f32 %v906, %v906
    %v1716 = vmul.f32 %v909, %v909
    %v1717 = vmul.f32 %v914, %v914
    %v1718 = vmul.f32 %v917, %v917
    %v1719 = vmul.f32 %v922, %v922
    %v1720 = vmul.f32 %v925, %v925
    %v1721 = vmul.f32 %v930, %v930
    %v1722 = vmul.f32 %v933, %v933
    %v1723 = vmul.f32 %v938, %v938
    %v1724 = vmul.f32 %v941, %v941
    %v1725 = vmul.f32 %v946, %v946
    %v1726 = vmul.f32 %v949, %v949
    %v1727 = vmul.f32 %v954, %v954
    %v1728 = vmul.f32 %v957, %v957
    %v1729 = vmul.f32 %v962, %v962
    %v1730 = vmul.f32 %v965, %v965
    %v1731 = vmul.f32 %v970, %v970
    %v1732 = vmul.f32 %v973, %v973
    %v1733 = vmul.f32 %v978, %v978
    %v1734 = vmul.f32 %v981, %v981
    %v1735 = vmul.f32 %v986, %v986
    %v1736 = vmul.f32 %v989, %v989
    %v1737 = vmul.f32 %v994, %v994
    %v1738 = vmul.f32 %v997, %v997
    %v1739 = vmul.f32 %v1002, %v1002
    %v1740 = vmul.f32 %v1005, %v1005
    %v1741 = vmul.f32 %v1010, %v1010
    %v1742 = vmul.f32 %v1013, %v1013
    %v1743 = vmul.f32 %v1018, %v1018
    %v1744 = vmul.f32 %v1021, %v1021
    %v1745 = vmul.f32 %v1026, %v1026
    %v1746 = vmul.f32 %v1029, %v1029
    %v1747 = vmul.f32 %v1034, %v1034
    %v1748 = vmul.f32 %v1037, %v1037
    %v1749 = vmul.f32 %v1042, %v1042
    %v1750 = vmul.f32 %v1045, %v1045
    %v1751 = vmul.f32 %v1050, %v1050
    %v1752 = vmul.f32 %v1053, %v1053
    %v1753 = vmul.f32 %v1058, %v1058
    %v1754 = vmul.f32 %v1061, %v1061
    %v1755 = vmul.f32 %v1066, %v1066
    %v1756 = vmul.f32 %v1069, %v1069
    %v1757 = vmul.f32 %v1074, %v1074
    %v1758 = vmul.f32 %v1077, %v1077
    %v1759 = vmul.f32 %v1082, %v1082
    %v1760 = vmul.f32 %v1085, %v1085
    %v1761 = vmul.f32 %v1090, %v1090
    %v1762 = vmul.f32 %v1093, %v1093
    %v1763 = vmul.f32 %v1098, %v1098
    %v1764 = vmul.f32 %v1101, %v1101
    %v1765 = vmul.f32 %v1106, %v1106
    %v1766 = vmul.f32 %v1109, %v1109
    %v1767 = vmul.f32 %v1114, %v1114
    %v1768 = vmul.f32 %v1117, %v1117
    %v1769 = vmul.f32 %v1122, %v1122
    %v1770 = vmul.f32 %v1125, %v1125
    %v1771 = vmul.f32 %v1130, %v1130
    %v1772 = vmul.f32 %v1133, %v1133
    %v1773 = vmul.f32 %v1138, %v1138
    %v1774 = vmul.f32 %v1141, %v1141
    %v1775 = vmul.f32 %v1146, %v1146
    %v1776 = vmul.f32 %v1149, %v1149
    %v1777 = vmul.f32 %v1154, %v1154
    %v1778 = vmul.f32 %v1157, %v1157
    %v1779 = vmul.f32 %v1162, %v1162
    %v1780 = vmul.f32 %v1165, %v1165
    %v1781 = vmul.f32 %v1170, %v1170
    %v1782 = vmul.f32 %v1173, %v1173
    %v1783 = vmul.f32 %v1178, %v1178
    %v1784 = vmul.f32 %v1181, %v1181
    %v1785 = vmul.f32 %v1186, %v1186
    %v1786 = vmul.f32 %v1189, %v1189
    %v1787 = vmul.f32 %v1194, %v1194
    %v1788 = vmul.f32 %v1197, %v1197
    %v1789 = vmul.f32 %v1202, %v1202
    %v1790 = vmul.f32 %v1205, %v1205
    %v1791 = vmul.f32 %v1210, %v1210
    %v1792 = vmul.f32 %v1213, %v1213
    %v1793 = vmul.f32 %v1218, %v1218
    %v1794 = vmul.f32 %v1221, %v1221
    %v1795 = vmul.f32 %v1226, %v1226
    %v1796 = vmul.f32 %v1229, %v1229
    %v1797 = vmul.f32 %v1234, %v1234
    %v1798 = vmul.f32 %v1237, %v1237
    %v1799 = vmul.f32 %v1242, %v1242
    %v1800 = vmul.f32 %v1245, %v1245
    %v1801 = vmul.f32 %v1250, %v1250
    %v1802 = vmul.f32 %v1253, %v1253
    %v1803 = vmul.f32 %v1258, %v1258
    %v1804 = vmul.f32 %v1261, %v1261
    %v1805 = vmul.f32 %v1266, %v1266
    %v1806 = vmul.f32 %v1269, %v1269
    %v1807 = vmul.f32 %v1274, %v1274
    %v1808 = vmul.f32 %v1277, %v1277
    %v1809 = vmul.f32 %v1282, %v1282
    %v1810 = vmul.f32 %v1285, %v1285
    %v1811 = vmul.f32 %v1290, %v1290
    %v1812 = vmul.f32 %v1293, %v1293
    %v1813 = vmul.f32 %v1298, %v1298
    %v1814 = vmul.f32 %v1301, %v1301
    %v1815 = vmul.f32 %v1306, %v1306
    %v1816 = vmul.f32 %v1309, %v1309
    %v1817 = vmul.f32 %v1314, %v1314
    %v1818 = vmul.f32 %v1317, %v1317
    %v1819 = vmul.f32 %v1322, %v1322
    %v1820 = vmul.f32 %v1325, %v1325
    %v1821 = vmul.f32 %v1330, %v1330
    %v1822 = vmul.f32 %v1333, %v1333
    %v1823 = vmul.f32 %v1338, %v1338
    %v1824 = vmul.f32 %v1341, %v1341
    %v1825 = vmul.f32 %v1346, %v1346
    %v1826 = vmul.f32 %v1349, %v1349
    %v1827 = vmul.f32 %v1354, %v1354
    %v1828 = vmul.f32 %v1357, %v1357
    %v1829 = vmul.f32 %v1362, %v1362
    %v1830 = vmul.f32 %v1365, %v1365
    %v1831 = vmul.f32 %v1370, %v1370
    %v1832 = vmul.f32 %v1373, %v1373
    %v1833 = vmul.f32 %v1378, %v1378
    %v1834 = vmul.f32 %v1381, %v1381
    %v1835 = vmul.f32 %v1386, %v1386
    %v1836 = vmul.f32 %v1389, %v1389
    %v1837 = vmul.f32 %v1394, %v1394
    %v1838 = vmul.f32 %v1397, %v1397
    %v1839 = vmul.f32 %v1402, %v1402
    %v1840 = vmul.f32 %v1405, %v1405
    %v1841 = vmul.f32 %v1410, %v1410
    %v1842 = vmul.f32 %v1413, %v1413
    %v1843 = vmul.f32 %v1418, %v1418
    %v1844 = vmul.f32 %v1421, %v1421
    %v1845 = vmul.f32 %v1426, %v1426
    %v1846 = vmul.f32 %v1429, %v1429
    %v1847 = vmul.f32 %v1434, %v1434
    %v1848 = vmul.f32 %v1437, %v1437
    %v1849 = vmul.f32 %v1442, %v1442
    %v1850 = vmul.f32 %v1445, %v1445
    %v1851 = vmul.f32 %v1450, %v1450
    %v1852 = vmul.f32 %v1453, %v1453
    %v1853 = vmul.f32 %v1458, %v1458
    %v1854 = vmul.f32 %v1461, %v1461
    %v1855 = vmul.f32 %v1466, %v1466
    %v1856 = vmul.f32 %v1469, %v1469
    %v1857 = vmul.f32 %v1474, %v1474
    %v1858 = vmul.f32 %v1477, %v1477
    %v1859 = vmul.f32 %v1482, %v1482
    %v1860 = vmul.f32 %v1485, %v1485
    %v1861 = vmul.f32 %v1490, %v1490
    %v1862 = vmul.f32 %v1493, %v1493
    %v1863 = vmul.f32 %v1498, %v1498
    %v1864 = vmul.f32 %v1501, %v1501
    %v1865 = vmul.f32 %v1506, %v1506
    %v1866 = vmul.f32 %v1509, %v1509
    %v1867 = vmul.f32 %v1514, %v1514
    %v1868 = vmul.f32 %v1517, %v1517
    %v1869 = vadd.f32 %v1697, %v1698
    %v1870 = vadd.f32 %v1869, %v1699
    %v1871 = vadd.f32 %v1870, %v1700
    %v1872 = vadd.f32 %v1871, %v1701
    %v1873 = vadd.f32 %v1872, %v1702
    %v1874 = vadd.f32 %v1873, %v1703
    %v1875 = vadd.f32 %v1874, %v1704
    %v1876 = vadd.f32 %v1875, %v1705
    %v1877 = vadd.f32 %v1876, %v1706
    %v1878 = vadd.f32 %v1877, %v1707
    %v1879 = vadd.f32 %v1878, %v1708
    %v1880 = vadd.f32 %v1879, %v1709
    %v1881 = vadd.f32 %v1880, %v1710
    %v1882 = vadd.f32 %v1881, %v1711
    %v1883 = vadd.f32 %v1882, %v1712
    %v1884 = vadd.f32 %v1883, %v1713
    %v1885 = vadd.f32 %v1884, %v1714
    %v1886 = vadd.f32 %v1885, %v1715
    %v1887 = vadd.f32 %v1886, %v1716
    %v1888 = vadd.f32 %v1887, %v1717
    %v1889 = vadd.f32 %v1888, %v1718
    %v1890 = vadd.f32 %v1889, %v1719
    %v1891 = vadd.f32 %v1890, %v1720
    %v1892 = vadd.f32 %v1891, %v1721
    %v1893 = vadd.f32 %v1892, %v1722
    %v1894 = vadd.f32 %v1893, %v1723
    %v1895 = vadd.f32 %v1894, %v1724
    %v1896 = vadd.f32 %v1895, %v1725
    %v1897 = vadd.f32 %v1896, %v1726
    %v1898 = vadd.f32 %v1897, %v1727
    %v1899 = vadd.f32 %v1898, %v1728
    %v1900 = vadd.f32 %v1899, %v1729
    %v1901 = vadd.f32 %v1900, %v1730
    %v1902 = vadd.f32 %v1901, %v1731
    %v1903 = vadd.f32 %v1902, %v1732
    %v1904 = vadd.f32 %v1903, %v1733
    %v1905 = vadd.f32 %v1904, %v1734
    %v1906 = vadd.f32 %v1905, %v1735
    %v1907 = vadd.f32 %v1906, %v1736
    %v1908 = vadd.f32 %v1907, %v1737
    %v1909 = vadd.f32 %v1908, %v1738
    %v1910 = vadd.f32 %v1909, %v1739
    %v1911 = vadd.f32 %v1910, %v1740
    %v1912 = vadd.f32 %v1911, %v1741
    %v1913 = vadd.f32 %v1912, %v1742
    %v1914 = vadd.f32 %v1913, %v1743
    %v1915 = vadd.f32 %v1914, %v1744
    %v1916 = vadd.f32 %v1915, %v1745
    %v1917 = vadd.f32 %v1916, %v1746
    %v1918 = vadd.f32 %v1917, %v1747
    %v1919 = vadd.f32 %v1918, %v1748
    %v1920 = vadd.f32 %v1919, %v1749
    %v1921 = vadd.f32 %v1920, %v1750
    %v1922 = vadd.f32 %v1921, %v1751
    %v1923 = vadd.f32 %v1922, %v1752
    %v1924 = vadd.f32 %v1923, %v1753
    %v1925 = vadd.f32 %v1924, %v1754
    %v1926 = vadd.f32 %v1925, %v1755
    %v1927 = vadd.f32 %v1926, %v1756
    %v1928 = vadd.f32 %v1927, %v1757
    %v1929 = vadd.f32 %v1928, %v1758
    %v1930 = vadd.f32 %v1929, %v1759
    %v1931 = vadd.f32 %v1930, %v1760
    %v1932 = vadd.f32 %v1931, %v1761
    %v1933 = vadd.f32 %v1932, %v1762
    %v1934 = vadd.f32 %v1933, %v1763
    %v1935 = vadd.f32 %v1934, %v1764
    %v1936 = vadd.f32 %v1935, %v1765
    %v1937 = vadd.f32 %v1936, %v1766
    %v1938 = vadd.f32 %v1937, %v1767
    %v1939 = vadd.f32 %v1938, %v1768
    %v1940 = vadd.f32 %v1939, %v1769
    %v1941 = vadd.f32 %v1940, %v1770
    %v1942 = vadd.f32 %v1941, %v1771
    %v1943 = vadd.f32 %v1942, %v1772
    %v1944 = vadd.f32 %v1943, %v1773
    %v1945 = vadd.f32 %v1944, %v1774
    %v1946 = vadd.f32 %v1945, %v1775
    %v1947 = vadd.f32 %v1946, %v1776
    %v1948 = vadd.f32 %v1947, %v1777
    %v1949 = vadd.f32 %v1948, %v1778
    %v1950 = vadd.f32 %v1949, %v1779
    %v1951 = vadd.f32 %v1950, %v1780
    %v1952 = vadd.f32 %v1951, %v1781
    %v1953 = vadd.f32 %v1952, %v1782
    %v1954 = vadd.f32 %v1953, %v1783
    %v1955 = vadd.f32 %v1954, %v1784
    %v1956 = vadd.f32 %v1955, %v1785
    %v1957 = vadd.f32 %v1956, %v1786
    %v1958 = vadd.f32 %v1957, %v1787
    %v1959 = vadd.f32 %v1958, %v1788
    %v1960 = vadd.f32 %v1959, %v1789
    %v1961 = vadd.f32 %v1960, %v1790
    %v1962 = vadd.f32 %v1961, %v1791
    %v1963 = vadd.f32 %v1962, %v1792
    %v1964 = vadd.f32 %v1963, %v1793
    %v1965 = vadd.f32 %v1964, %v1794
    %v1966 = vadd.f32 %v1965, %v1795
    %v1967 = vadd.f32 %v1966, %v1796
    %v1968 = vadd.f32 %v1967, %v1797
    %v1969 = vadd.f32 %v1968, %v1798
    %v1970 = vadd.f32 %v1969, %v1799
    %v1971 = vadd.f32 %v1970, %v1800
    %v1972 = vadd.f32 %v1971, %v1801
    %v1973 = vadd.f32 %v1972, %v1802
    %v1974 = vadd.f32 %v1973, %v1803
    %v1975 = vadd.f32 %v1974, %v1804
    %v1976 = vadd.f32 %v1975, %v1805
    %v1977 = vadd.f32 %v1976, %v1806
    %v1978 = vadd.f32 %v1977, %v1807
    %v1979 = vadd.f32 %v1978, %v1808
    %v1980 = vadd.f32 %v1979, %v1809
    %v1981 = vadd.f32 %v1980, %v1810
    %v1982 = vadd.f32 %v1981, %v1811
    %v1983 = vadd.f32 %v1982, %v1812
    %v1984 = vadd.f32 %v1983, %v1813
    %v1985 = vadd.f32 %v1984, %v1814
    %v1986 = vadd.f32 %v1985, %v1815
    %v1987 = vadd.f32 %v1986, %v1816
    %v1988 = vadd.f32 %v1987, %v1817
    %v1989 = vadd.f32 %v1988, %v1818
    %v1990 = vadd.f32 %v1989, %v1819
    %v1991 = vadd.f32 %v1990, %v1820
    %v1992 = vadd.f32 %v1991, %v1821
    %v1993 = vadd.f32 %v1992, %v1822
    %v1994 = vadd.f32 %v1993, %v1823
    %v1995 = vadd.f32 %v1994, %v1824
    %v1996 = vadd.f32 %v1995, %v1825
    %v1997 = vadd.f32 %v1996, %v1826
    %v1998 = vadd.f32 %v1997, %v1827
    %v1999 = vadd.f32 %v1998, %v1828
    %v2000 = vadd.f32 %v1999, %v1829
    %v2001 = vadd.f32 %v2000, %v1830
    %v2002 = vadd.f32 %v2001, %v1831
    %v2003 = vadd.f32 %v2002, %v1832
    %v2004 = vadd.f32 %v2003, %v1833
    %v2005 = vadd.f32 %v2004, %v1834
    %v2006 = vadd.f32 %v2005, %v1835
    %v2007 = vadd.f32 %v2006, %v1836
    %v2008 = vadd.f32 %v2007, %v1837
    %v2009 = vadd.f32 %v2008, %v1838
    %v2010 = vadd.f32 %v2009, %v1839
    %v2011 = vadd.f32 %v2010, %v1840
    %v2012 = vadd.f32 %v2011, %v1841
    %v2013 = vadd.f32 %v2012, %v1842
    %v2014 = vadd.f32 %v2013, %v1843
    %v2015 = vadd.f32 %v2014, %v1844
    %v2016 = vadd.f32 %v2015, %v1845
    %v2017 = vadd.f32 %v2016, %v1846
    %v2018 = vadd.f32 %v2017, %v1847
    %v2019 = vadd.f32 %v2018, %v1848
    %v2020 = vadd.f32 %v2019, %v1849
    %v2021 = vadd.f32 %v2020, %v1850
    %v2022 = vadd.f32 %v2021, %v1851
    %v2023 = vadd.f32 %v2022, %v1852
    %v2024 = vadd.f32 %v2023, %v1853
    %v2025 = vadd.f32 %v2024, %v1854
    %v2026 = vadd.f32 %v2025, %v1855
    %v2027 = vadd.f32 %v2026, %v1856
    %v2028 = vadd.f32 %v2027, %v1857
    %v2029 = vadd.f32 %v2028, %v1858
    %v2030 = vadd.f32 %v2029, %v1859
    %v2031 = vadd.f32 %v2030, %v1860
    %v2032 = vadd.f32 %v2031, %v1861
    %v2033 = vadd.f32 %v2032, %v1862
    %v2034 = vadd.f32 %v2033, %v1863
    %v2035 = vadd.f32 %v2034, %v1864
    %v2036 = vadd.f32 %v2035, %v1865
    %v2037 = vadd.f32 %v2036, %v1866
    %v2038 = vadd.f32 %v2037, %v1867
    %v2039 = vadd.f32 %v2038, %v1868
    %v2040 = vrot.slane %v2039, 4
    %v2041 = vadd.f32 %v2039, %v2040
    %v2042 = vrot.slane %v2041, 2
    %v2043 = vadd.f32 %v2041, %v2042
    %v2044 = vrot.slane %v2043, 1
    %v2045 = vadd.f32 %v2043, %v2044
    %v2046 = vmul.f32 %v1696, 0.000728863
    %v2047 = vmul.f32 %v2045, 0.000728863
    %v2048 = vmul.f32 %v2046, %v2046
    %v2049 = vsub.f32 %v2047, %v2048
    %v2050 = vmax.f32 %v2049, 0.0
    %v2051 = vld [vmem:[%s2] sm:$0x1]
    %v2052 = vadd.f32 %v2050, 1e-05
    %v2053 = vrsqrt.pop %v2052
    %v2054 = vmul.f32 %v2051, %v2053
    %v2055 = vld [vmem:[%s3] sm:$0x1]
    %v2056 = vmul.f32 %v2046, %v2054
    %v2057 = vsub.f32 %v2055, %v2056
    %v2059 = vlaneseq
    %v2060 = vshrl.u32 %v2059, 7
    %v2061 = vsub.s32 0, %v2060
    %v2062 = vrot.slane %v2054, %v2061
    %v2064 = vmul.f32 %v834, %v2062
    %v2065 = vmul.f32 %v837, %v2062
    %v2066 = vmul.f32 %v842, %v2062
    %v2067 = vmul.f32 %v845, %v2062
    %v2068 = vmul.f32 %v850, %v2062
    %v2069 = vmul.f32 %v853, %v2062
    %v2070 = vmul.f32 %v858, %v2062
    %v2071 = vmul.f32 %v861, %v2062
    %v2072 = vmul.f32 %v866, %v2062
    %v2073 = vmul.f32 %v869, %v2062
    %v2074 = vmul.f32 %v874, %v2062
    %v2075 = vmul.f32 %v877, %v2062
    %v2076 = vmul.f32 %v882, %v2062
    %v2077 = vmul.f32 %v885, %v2062
    %v2078 = vmul.f32 %v890, %v2062
    %v2079 = vmul.f32 %v893, %v2062
    %v2080 = vmul.f32 %v898, %v2062
    %v2081 = vmul.f32 %v901, %v2062
    %v2082 = vmul.f32 %v906, %v2062
    %v2083 = vmul.f32 %v909, %v2062
    %v2084 = vmul.f32 %v914, %v2062
    %v2085 = vmul.f32 %v917, %v2062
    %v2086 = vmul.f32 %v922, %v2062
    %v2087 = vmul.f32 %v925, %v2062
    %v2088 = vmul.f32 %v930, %v2062
    %v2089 = vmul.f32 %v933, %v2062
    %v2090 = vmul.f32 %v938, %v2062
    %v2091 = vmul.f32 %v941, %v2062
    %v2092 = vmul.f32 %v946, %v2062
    %v2093 = vmul.f32 %v949, %v2062
    %v2094 = vmul.f32 %v954, %v2062
    %v2095 = vmul.f32 %v957, %v2062
    %v2096 = vmul.f32 %v962, %v2062
    %v2097 = vmul.f32 %v965, %v2062
    %v2098 = vmul.f32 %v970, %v2062
    %v2099 = vmul.f32 %v973, %v2062
    %v2100 = vmul.f32 %v978, %v2062
    %v2101 = vmul.f32 %v981, %v2062
    %v2102 = vmul.f32 %v986, %v2062
    %v2103 = vmul.f32 %v989, %v2062
    %v2104 = vmul.f32 %v994, %v2062
    %v2105 = vmul.f32 %v997, %v2062
    %v2106 = vmul.f32 %v1002, %v2062
    %v2107 = vmul.f32 %v1005, %v2062
    %v2108 = vmul.f32 %v1010, %v2062
    %v2109 = vmul.f32 %v1013, %v2062
    %v2110 = vmul.f32 %v1018, %v2062
    %v2111 = vmul.f32 %v1021, %v2062
    %v2112 = vmul.f32 %v1026, %v2062
    %v2113 = vmul.f32 %v1029, %v2062
    %v2114 = vmul.f32 %v1034, %v2062
    %v2115 = vmul.f32 %v1037, %v2062
    %v2116 = vmul.f32 %v1042, %v2062
    %v2117 = vmul.f32 %v1045, %v2062
    %v2118 = vmul.f32 %v1050, %v2062
    %v2119 = vmul.f32 %v1053, %v2062
    %v2120 = vmul.f32 %v1058, %v2062
    %v2121 = vmul.f32 %v1061, %v2062
    %v2122 = vmul.f32 %v1066, %v2062
    %v2123 = vmul.f32 %v1069, %v2062
    %v2124 = vmul.f32 %v1074, %v2062
    %v2125 = vmul.f32 %v1077, %v2062
    %v2126 = vmul.f32 %v1082, %v2062
    %v2127 = vmul.f32 %v1085, %v2062
    %v2128 = vmul.f32 %v1090, %v2062
    %v2129 = vmul.f32 %v1093, %v2062
    %v2130 = vmul.f32 %v1098, %v2062
    %v2131 = vmul.f32 %v1101, %v2062
    %v2132 = vmul.f32 %v1106, %v2062
    %v2133 = vmul.f32 %v1109, %v2062
    %v2134 = vmul.f32 %v1114, %v2062
    %v2135 = vmul.f32 %v1117, %v2062
    %v2136 = vmul.f32 %v1122, %v2062
    %v2137 = vmul.f32 %v1125, %v2062
    %v2138 = vmul.f32 %v1130, %v2062
    %v2139 = vmul.f32 %v1133, %v2062
    %v2140 = vmul.f32 %v1138, %v2062
    %v2141 = vmul.f32 %v1141, %v2062
    %v2142 = vmul.f32 %v1146, %v2062
    %v2143 = vmul.f32 %v1149, %v2062
    %v2144 = vmul.f32 %v1154, %v2062
    %v2145 = vmul.f32 %v1157, %v2062
    %v2146 = vmul.f32 %v1162, %v2062
    %v2147 = vmul.f32 %v1165, %v2062
    %v2148 = vmul.f32 %v1170, %v2062
    %v2149 = vmul.f32 %v1173, %v2062
    %v2150 = vmul.f32 %v1178, %v2062
    %v2151 = vmul.f32 %v1181, %v2062
    %v2152 = vmul.f32 %v1186, %v2062
    %v2153 = vmul.f32 %v1189, %v2062
    %v2154 = vmul.f32 %v1194, %v2062
    %v2155 = vmul.f32 %v1197, %v2062
    %v2156 = vmul.f32 %v1202, %v2062
    %v2157 = vmul.f32 %v1205, %v2062
    %v2158 = vmul.f32 %v1210, %v2062
    %v2159 = vmul.f32 %v1213, %v2062
    %v2160 = vmul.f32 %v1218, %v2062
    %v2161 = vmul.f32 %v1221, %v2062
    %v2162 = vmul.f32 %v1226, %v2062
    %v2163 = vmul.f32 %v1229, %v2062
    %v2164 = vmul.f32 %v1234, %v2062
    %v2165 = vmul.f32 %v1237, %v2062
    %v2166 = vmul.f32 %v1242, %v2062
    %v2167 = vmul.f32 %v1245, %v2062
    %v2168 = vmul.f32 %v1250, %v2062
    %v2169 = vmul.f32 %v1253, %v2062
    %v2170 = vmul.f32 %v1258, %v2062
    %v2171 = vmul.f32 %v1261, %v2062
    %v2172 = vmul.f32 %v1266, %v2062
    %v2173 = vmul.f32 %v1269, %v2062
    %v2174 = vmul.f32 %v1274, %v2062
    %v2175 = vmul.f32 %v1277, %v2062
    %v2176 = vmul.f32 %v1282, %v2062
    %v2177 = vmul.f32 %v1285, %v2062
    %v2178 = vmul.f32 %v1290, %v2062
    %v2179 = vmul.f32 %v1293, %v2062
    %v2180 = vmul.f32 %v1298, %v2062
    %v2181 = vmul.f32 %v1301, %v2062
    %v2182 = vmul.f32 %v1306, %v2062
    %v2183 = vmul.f32 %v1309, %v2062
    %v2184 = vmul.f32 %v1314, %v2062
    %v2185 = vmul.f32 %v1317, %v2062
    %v2186 = vmul.f32 %v1322, %v2062
    %v2187 = vmul.f32 %v1325, %v2062
    %v2188 = vmul.f32 %v1330, %v2062
    %v2189 = vmul.f32 %v1333, %v2062
    %v2190 = vmul.f32 %v1338, %v2062
    %v2191 = vmul.f32 %v1341, %v2062
    %v2192 = vmul.f32 %v1346, %v2062
    %v2193 = vmul.f32 %v1349, %v2062
    %v2194 = vmul.f32 %v1354, %v2062
    %v2195 = vmul.f32 %v1357, %v2062
    %v2196 = vmul.f32 %v1362, %v2062
    %v2197 = vmul.f32 %v1365, %v2062
    %v2198 = vmul.f32 %v1370, %v2062
    %v2199 = vmul.f32 %v1373, %v2062
    %v2200 = vmul.f32 %v1378, %v2062
    %v2201 = vmul.f32 %v1381, %v2062
    %v2202 = vmul.f32 %v1386, %v2062
    %v2203 = vmul.f32 %v1389, %v2062
    %v2204 = vmul.f32 %v1394, %v2062
    %v2205 = vmul.f32 %v1397, %v2062
    %v2206 = vmul.f32 %v1402, %v2062
    %v2207 = vmul.f32 %v1405, %v2062
    %v2208 = vmul.f32 %v1410, %v2062
    %v2209 = vmul.f32 %v1413, %v2062
    %v2210 = vmul.f32 %v1418, %v2062
    %v2211 = vmul.f32 %v1421, %v2062
    %v2212 = vmul.f32 %v1426, %v2062
    %v2213 = vmul.f32 %v1429, %v2062
    %v2214 = vmul.f32 %v1434, %v2062
    %v2215 = vmul.f32 %v1437, %v2062
    %v2216 = vmul.f32 %v1442, %v2062
    %v2217 = vmul.f32 %v1445, %v2062
    %v2218 = vmul.f32 %v1450, %v2062
    %v2219 = vmul.f32 %v1453, %v2062
    %v2220 = vmul.f32 %v1458, %v2062
    %v2221 = vmul.f32 %v1461, %v2062
    %v2222 = vmul.f32 %v1466, %v2062
    %v2223 = vmul.f32 %v1469, %v2062
    %v2224 = vmul.f32 %v1474, %v2062
    %v2225 = vmul.f32 %v1477, %v2062
    %v2226 = vmul.f32 %v1482, %v2062
    %v2227 = vmul.f32 %v1485, %v2062
    %v2228 = vmul.f32 %v1490, %v2062
    %v2229 = vmul.f32 %v1493, %v2062
    %v2230 = vmul.f32 %v1498, %v2062
    %v2231 = vmul.f32 %v1501, %v2062
    %v2232 = vmul.f32 %v1506, %v2062
    %v2233 = vmul.f32 %v1509, %v2062
    %v2234 = vmul.f32 %v1514, %v2062
    %v2235 = vmul.f32 %v1517, %v2062
    %v2237 = vlaneseq
    %v2238 = vshrl.u32 %v2237, 7
    %v2239 = vsub.s32 0, %v2238
    %v2240 = vrot.slane %v2057, %v2239
    %v2242 = vadd.f32 %v2064, %v2240
    %v2243 = vadd.f32 %v2065, %v2240
    %v2244 = vadd.f32 %v2066, %v2240
    %v2245 = vadd.f32 %v2067, %v2240
    %v2246 = vadd.f32 %v2068, %v2240
    %v2247 = vadd.f32 %v2069, %v2240
    %v2248 = vadd.f32 %v2070, %v2240
    %v2249 = vadd.f32 %v2071, %v2240
    %v2250 = vadd.f32 %v2072, %v2240
    %v2251 = vadd.f32 %v2073, %v2240
    %v2252 = vadd.f32 %v2074, %v2240
    %v2253 = vadd.f32 %v2075, %v2240
    %v2254 = vadd.f32 %v2076, %v2240
    %v2255 = vadd.f32 %v2077, %v2240
    %v2256 = vadd.f32 %v2078, %v2240
    %v2257 = vadd.f32 %v2079, %v2240
    %v2258 = vadd.f32 %v2080, %v2240
    %v2259 = vadd.f32 %v2081, %v2240
    %v2260 = vadd.f32 %v2082, %v2240
    %v2261 = vadd.f32 %v2083, %v2240
    %v2262 = vadd.f32 %v2084, %v2240
    %v2263 = vadd.f32 %v2085, %v2240
    %v2264 = vadd.f32 %v2086, %v2240
    %v2265 = vadd.f32 %v2087, %v2240
    %v2266 = vadd.f32 %v2088, %v2240
    %v2267 = vadd.f32 %v2089, %v2240
    %v2268 = vadd.f32 %v2090, %v2240
    %v2269 = vadd.f32 %v2091, %v2240
    %v2270 = vadd.f32 %v2092, %v2240
    %v2271 = vadd.f32 %v2093, %v2240
    %v2272 = vadd.f32 %v2094, %v2240
    %v2273 = vadd.f32 %v2095, %v2240
    %v2274 = vadd.f32 %v2096, %v2240
    %v2275 = vadd.f32 %v2097, %v2240
    %v2276 = vadd.f32 %v2098, %v2240
    %v2277 = vadd.f32 %v2099, %v2240
    %v2278 = vadd.f32 %v2100, %v2240
    %v2279 = vadd.f32 %v2101, %v2240
    %v2280 = vadd.f32 %v2102, %v2240
    %v2281 = vadd.f32 %v2103, %v2240
    %v2282 = vadd.f32 %v2104, %v2240
    %v2283 = vadd.f32 %v2105, %v2240
    %v2284 = vadd.f32 %v2106, %v2240
    %v2285 = vadd.f32 %v2107, %v2240
    %v2286 = vadd.f32 %v2108, %v2240
    %v2287 = vadd.f32 %v2109, %v2240
    %v2288 = vadd.f32 %v2110, %v2240
    %v2289 = vadd.f32 %v2111, %v2240
    %v2290 = vadd.f32 %v2112, %v2240
    %v2291 = vadd.f32 %v2113, %v2240
    %v2292 = vadd.f32 %v2114, %v2240
    %v2293 = vadd.f32 %v2115, %v2240
    %v2294 = vadd.f32 %v2116, %v2240
    %v2295 = vadd.f32 %v2117, %v2240
    %v2296 = vadd.f32 %v2118, %v2240
    %v2297 = vadd.f32 %v2119, %v2240
    %v2298 = vadd.f32 %v2120, %v2240
    %v2299 = vadd.f32 %v2121, %v2240
    %v2300 = vadd.f32 %v2122, %v2240
    %v2301 = vadd.f32 %v2123, %v2240
    %v2302 = vadd.f32 %v2124, %v2240
    %v2303 = vadd.f32 %v2125, %v2240
    %v2304 = vadd.f32 %v2126, %v2240
    %v2305 = vadd.f32 %v2127, %v2240
    %v2306 = vadd.f32 %v2128, %v2240
    %v2307 = vadd.f32 %v2129, %v2240
    %v2308 = vadd.f32 %v2130, %v2240
    %v2309 = vadd.f32 %v2131, %v2240
    %v2310 = vadd.f32 %v2132, %v2240
    %v2311 = vadd.f32 %v2133, %v2240
    %v2312 = vadd.f32 %v2134, %v2240
    %v2313 = vadd.f32 %v2135, %v2240
    %v2314 = vadd.f32 %v2136, %v2240
    %v2315 = vadd.f32 %v2137, %v2240
    %v2316 = vadd.f32 %v2138, %v2240
    %v2317 = vadd.f32 %v2139, %v2240
    %v2318 = vadd.f32 %v2140, %v2240
    %v2319 = vadd.f32 %v2141, %v2240
    %v2320 = vadd.f32 %v2142, %v2240
    %v2321 = vadd.f32 %v2143, %v2240
    %v2322 = vadd.f32 %v2144, %v2240
    %v2323 = vadd.f32 %v2145, %v2240
    %v2324 = vadd.f32 %v2146, %v2240
    %v2325 = vadd.f32 %v2147, %v2240
    %v2326 = vadd.f32 %v2148, %v2240
    %v2327 = vadd.f32 %v2149, %v2240
    %v2328 = vadd.f32 %v2150, %v2240
    %v2329 = vadd.f32 %v2151, %v2240
    %v2330 = vadd.f32 %v2152, %v2240
    %v2331 = vadd.f32 %v2153, %v2240
    %v2332 = vadd.f32 %v2154, %v2240
    %v2333 = vadd.f32 %v2155, %v2240
    %v2334 = vadd.f32 %v2156, %v2240
    %v2335 = vadd.f32 %v2157, %v2240
    %v2336 = vadd.f32 %v2158, %v2240
    %v2337 = vadd.f32 %v2159, %v2240
    %v2338 = vadd.f32 %v2160, %v2240
    %v2339 = vadd.f32 %v2161, %v2240
    %v2340 = vadd.f32 %v2162, %v2240
    %v2341 = vadd.f32 %v2163, %v2240
    %v2342 = vadd.f32 %v2164, %v2240
    %v2343 = vadd.f32 %v2165, %v2240
    %v2344 = vadd.f32 %v2166, %v2240
    %v2345 = vadd.f32 %v2167, %v2240
    %v2346 = vadd.f32 %v2168, %v2240
    %v2347 = vadd.f32 %v2169, %v2240
    %v2348 = vadd.f32 %v2170, %v2240
    %v2349 = vadd.f32 %v2171, %v2240
    %v2350 = vadd.f32 %v2172, %v2240
    %v2351 = vadd.f32 %v2173, %v2240
    %v2352 = vadd.f32 %v2174, %v2240
    %v2353 = vadd.f32 %v2175, %v2240
    %v2354 = vadd.f32 %v2176, %v2240
    %v2355 = vadd.f32 %v2177, %v2240
    %v2356 = vadd.f32 %v2178, %v2240
    %v2357 = vadd.f32 %v2179, %v2240
    %v2358 = vadd.f32 %v2180, %v2240
    %v2359 = vadd.f32 %v2181, %v2240
    %v2360 = vadd.f32 %v2182, %v2240
    %v2361 = vadd.f32 %v2183, %v2240
    %v2362 = vadd.f32 %v2184, %v2240
    %v2363 = vadd.f32 %v2185, %v2240
    %v2364 = vadd.f32 %v2186, %v2240
    %v2365 = vadd.f32 %v2187, %v2240
    %v2366 = vadd.f32 %v2188, %v2240
    %v2367 = vadd.f32 %v2189, %v2240
    %v2368 = vadd.f32 %v2190, %v2240
    %v2369 = vadd.f32 %v2191, %v2240
    %v2370 = vadd.f32 %v2192, %v2240
    %v2371 = vadd.f32 %v2193, %v2240
    %v2372 = vadd.f32 %v2194, %v2240
    %v2373 = vadd.f32 %v2195, %v2240
    %v2374 = vadd.f32 %v2196, %v2240
    %v2375 = vadd.f32 %v2197, %v2240
    %v2376 = vadd.f32 %v2198, %v2240
    %v2377 = vadd.f32 %v2199, %v2240
    %v2378 = vadd.f32 %v2200, %v2240
    %v2379 = vadd.f32 %v2201, %v2240
    %v2380 = vadd.f32 %v2202, %v2240
    %v2381 = vadd.f32 %v2203, %v2240
    %v2382 = vadd.f32 %v2204, %v2240
    %v2383 = vadd.f32 %v2205, %v2240
    %v2384 = vadd.f32 %v2206, %v2240
    %v2385 = vadd.f32 %v2207, %v2240
    %v2386 = vadd.f32 %v2208, %v2240
    %v2387 = vadd.f32 %v2209, %v2240
    %v2388 = vadd.f32 %v2210, %v2240
    %v2389 = vadd.f32 %v2211, %v2240
    %v2390 = vadd.f32 %v2212, %v2240
    %v2391 = vadd.f32 %v2213, %v2240
    %v2392 = vadd.f32 %v2214, %v2240
    %v2393 = vadd.f32 %v2215, %v2240
    %v2394 = vadd.f32 %v2216, %v2240
    %v2395 = vadd.f32 %v2217, %v2240
    %v2396 = vadd.f32 %v2218, %v2240
    %v2397 = vadd.f32 %v2219, %v2240
    %v2398 = vadd.f32 %v2220, %v2240
    %v2399 = vadd.f32 %v2221, %v2240
    %v2400 = vadd.f32 %v2222, %v2240
    %v2401 = vadd.f32 %v2223, %v2240
    %v2402 = vadd.f32 %v2224, %v2240
    %v2403 = vadd.f32 %v2225, %v2240
    %v2404 = vadd.f32 %v2226, %v2240
    %v2405 = vadd.f32 %v2227, %v2240
    %v2406 = vadd.f32 %v2228, %v2240
    %v2407 = vadd.f32 %v2229, %v2240
    %v2408 = vadd.f32 %v2230, %v2240
    %v2409 = vadd.f32 %v2231, %v2240
    %v2410 = vadd.f32 %v2232, %v2240
    %v2411 = vadd.f32 %v2233, %v2240
    %v2412 = vadd.f32 %v2234, %v2240
    %v2413 = vadd.f32 %v2235, %v2240
    %v2414 = vmax.f32 %v2242, 0.0
    %v2415 = vmax.f32 %v2243, 0.0
    %v2416 = vmax.f32 %v2244, 0.0
    %v2417 = vmax.f32 %v2245, 0.0
    %v2418 = vmax.f32 %v2246, 0.0
    %v2419 = vmax.f32 %v2247, 0.0
    %v2420 = vmax.f32 %v2248, 0.0
    %v2421 = vmax.f32 %v2249, 0.0
    %v2422 = vmax.f32 %v2250, 0.0
    %v2423 = vmax.f32 %v2251, 0.0
    %v2424 = vmax.f32 %v2252, 0.0
    %v2425 = vmax.f32 %v2253, 0.0
    %v2426 = vmax.f32 %v2254, 0.0
    %v2427 = vmax.f32 %v2255, 0.0
    %v2428 = vmax.f32 %v2256, 0.0
    %v2429 = vmax.f32 %v2257, 0.0
    %v2430 = vmax.f32 %v2258, 0.0
    %v2431 = vmax.f32 %v2259, 0.0
    %v2432 = vmax.f32 %v2260, 0.0
    %v2433 = vmax.f32 %v2261, 0.0
    %v2434 = vmax.f32 %v2262, 0.0
    %v2435 = vmax.f32 %v2263, 0.0
    %v2436 = vmax.f32 %v2264, 0.0
    %v2437 = vmax.f32 %v2265, 0.0
    %v2438 = vmax.f32 %v2266, 0.0
    %v2439 = vmax.f32 %v2267, 0.0
    %v2440 = vmax.f32 %v2268, 0.0
    %v2441 = vmax.f32 %v2269, 0.0
    %v2442 = vmax.f32 %v2270, 0.0
    %v2443 = vmax.f32 %v2271, 0.0
    %v2444 = vmax.f32 %v2272, 0.0
    %v2445 = vmax.f32 %v2273, 0.0
    %v2446 = vmax.f32 %v2274, 0.0
    %v2447 = vmax.f32 %v2275, 0.0
    %v2448 = vmax.f32 %v2276, 0.0
    %v2449 = vmax.f32 %v2277, 0.0
    %v2450 = vmax.f32 %v2278, 0.0
    %v2451 = vmax.f32 %v2279, 0.0
    %v2452 = vmax.f32 %v2280, 0.0
    %v2453 = vmax.f32 %v2281, 0.0
    %v2454 = vmax.f32 %v2282, 0.0
    %v2455 = vmax.f32 %v2283, 0.0
    %v2456 = vmax.f32 %v2284, 0.0
    %v2457 = vmax.f32 %v2285, 0.0
    %v2458 = vmax.f32 %v2286, 0.0
    %v2459 = vmax.f32 %v2287, 0.0
    %v2460 = vmax.f32 %v2288, 0.0
    %v2461 = vmax.f32 %v2289, 0.0
    %v2462 = vmax.f32 %v2290, 0.0
    %v2463 = vmax.f32 %v2291, 0.0
    %v2464 = vmax.f32 %v2292, 0.0
    %v2465 = vmax.f32 %v2293, 0.0
    %v2466 = vmax.f32 %v2294, 0.0
    %v2467 = vmax.f32 %v2295, 0.0
    %v2468 = vmax.f32 %v2296, 0.0
    %v2469 = vmax.f32 %v2297, 0.0
    %v2470 = vmax.f32 %v2298, 0.0
    %v2471 = vmax.f32 %v2299, 0.0
    %v2472 = vmax.f32 %v2300, 0.0
    %v2473 = vmax.f32 %v2301, 0.0
    %v2474 = vmax.f32 %v2302, 0.0
    %v2475 = vmax.f32 %v2303, 0.0
    %v2476 = vmax.f32 %v2304, 0.0
    %v2477 = vmax.f32 %v2305, 0.0
    %v2478 = vmax.f32 %v2306, 0.0
    %v2479 = vmax.f32 %v2307, 0.0
    %v2480 = vmax.f32 %v2308, 0.0
    %v2481 = vmax.f32 %v2309, 0.0
    %v2482 = vmax.f32 %v2310, 0.0
    %v2483 = vmax.f32 %v2311, 0.0
    %v2484 = vmax.f32 %v2312, 0.0
    %v2485 = vmax.f32 %v2313, 0.0
    %v2486 = vmax.f32 %v2314, 0.0
    %v2487 = vmax.f32 %v2315, 0.0
    %v2488 = vmax.f32 %v2316, 0.0
    %v2489 = vmax.f32 %v2317, 0.0
    %v2490 = vmax.f32 %v2318, 0.0
    %v2491 = vmax.f32 %v2319, 0.0
    %v2492 = vmax.f32 %v2320, 0.0
    %v2493 = vmax.f32 %v2321, 0.0
    %v2494 = vmax.f32 %v2322, 0.0
    %v2495 = vmax.f32 %v2323, 0.0
    %v2496 = vmax.f32 %v2324, 0.0
    %v2497 = vmax.f32 %v2325, 0.0
    %v2498 = vmax.f32 %v2326, 0.0
    %v2499 = vmax.f32 %v2327, 0.0
    %v2500 = vmax.f32 %v2328, 0.0
    %v2501 = vmax.f32 %v2329, 0.0
    %v2502 = vmax.f32 %v2330, 0.0
    %v2503 = vmax.f32 %v2331, 0.0
    %v2504 = vmax.f32 %v2332, 0.0
    %v2505 = vmax.f32 %v2333, 0.0
    %v2506 = vmax.f32 %v2334, 0.0
    %v2507 = vmax.f32 %v2335, 0.0
    %v2508 = vmax.f32 %v2336, 0.0
    %v2509 = vmax.f32 %v2337, 0.0
    %v2510 = vmax.f32 %v2338, 0.0
    %v2511 = vmax.f32 %v2339, 0.0
    %v2512 = vmax.f32 %v2340, 0.0
    %v2513 = vmax.f32 %v2341, 0.0
    %v2514 = vmax.f32 %v2342, 0.0
    %v2515 = vmax.f32 %v2343, 0.0
    %v2516 = vmax.f32 %v2344, 0.0
    %v2517 = vmax.f32 %v2345, 0.0
    %v2518 = vmax.f32 %v2346, 0.0
    %v2519 = vmax.f32 %v2347, 0.0
    %v2520 = vmax.f32 %v2348, 0.0
    %v2521 = vmax.f32 %v2349, 0.0
    %v2522 = vmax.f32 %v2350, 0.0
    %v2523 = vmax.f32 %v2351, 0.0
    %v2524 = vmax.f32 %v2352, 0.0
    %v2525 = vmax.f32 %v2353, 0.0
    %v2526 = vmax.f32 %v2354, 0.0
    %v2527 = vmax.f32 %v2355, 0.0
    %v2528 = vmax.f32 %v2356, 0.0
    %v2529 = vmax.f32 %v2357, 0.0
    %v2530 = vmax.f32 %v2358, 0.0
    %v2531 = vmax.f32 %v2359, 0.0
    %v2532 = vmax.f32 %v2360, 0.0
    %v2533 = vmax.f32 %v2361, 0.0
    %v2534 = vmax.f32 %v2362, 0.0
    %v2535 = vmax.f32 %v2363, 0.0
    %v2536 = vmax.f32 %v2364, 0.0
    %v2537 = vmax.f32 %v2365, 0.0
    %v2538 = vmax.f32 %v2366, 0.0
    %v2539 = vmax.f32 %v2367, 0.0
    %v2540 = vmax.f32 %v2368, 0.0
    %v2541 = vmax.f32 %v2369, 0.0
    %v2542 = vmax.f32 %v2370, 0.0
    %v2543 = vmax.f32 %v2371, 0.0
    %v2544 = vmax.f32 %v2372, 0.0
    %v2545 = vmax.f32 %v2373, 0.0
    %v2546 = vmax.f32 %v2374, 0.0
    %v2547 = vmax.f32 %v2375, 0.0
    %v2548 = vmax.f32 %v2376, 0.0
    %v2549 = vmax.f32 %v2377, 0.0
    %v2550 = vmax.f32 %v2378, 0.0
    %v2551 = vmax.f32 %v2379, 0.0
    %v2552 = vmax.f32 %v2380, 0.0
    %v2553 = vmax.f32 %v2381, 0.0
    %v2554 = vmax.f32 %v2382, 0.0
    %v2555 = vmax.f32 %v2383, 0.0
    %v2556 = vmax.f32 %v2384, 0.0
    %v2557 = vmax.f32 %v2385, 0.0
    %v2558 = vmax.f32 %v2386, 0.0
    %v2559 = vmax.f32 %v2387, 0.0
    %v2560 = vmax.f32 %v2388, 0.0
    %v2561 = vmax.f32 %v2389, 0.0
    %v2562 = vmax.f32 %v2390, 0.0
    %v2563 = vmax.f32 %v2391, 0.0
    %v2564 = vmax.f32 %v2392, 0.0
    %v2565 = vmax.f32 %v2393, 0.0
    %v2566 = vmax.f32 %v2394, 0.0
    %v2567 = vmax.f32 %v2395, 0.0
    %v2568 = vmax.f32 %v2396, 0.0
    %v2569 = vmax.f32 %v2397, 0.0
    %v2570 = vmax.f32 %v2398, 0.0
    %v2571 = vmax.f32 %v2399, 0.0
    %v2572 = vmax.f32 %v2400, 0.0
    %v2573 = vmax.f32 %v2401, 0.0
    %v2574 = vmax.f32 %v2402, 0.0
    %v2575 = vmax.f32 %v2403, 0.0
    %v2576 = vmax.f32 %v2404, 0.0
    %v2577 = vmax.f32 %v2405, 0.0
    %v2578 = vmax.f32 %v2406, 0.0
    %v2579 = vmax.f32 %v2407, 0.0
    %v2580 = vmax.f32 %v2408, 0.0
    %v2581 = vmax.f32 %v2409, 0.0
    %v2582 = vmax.f32 %v2410, 0.0
    %v2583 = vmax.f32 %v2411, 0.0
    %v2584 = vmax.f32 %v2412, 0.0
    %v2585 = vmax.f32 %v2413, 0.0
    %2586 = vst [vmem:[#allocation7] sm:$0xff] %v2414
    %2587 = vst [vmem:[#allocation7 + $0x8] sm:$0xff] %v2415
    %2588 = vst [vmem:[#allocation7 + $0x10] sm:$0xff] %v2416
    %2589 = vst [vmem:[#allocation7 + $0x18] sm:$0xff] %v2417
    %2590 = vst [vmem:[#allocation7 + $0x20] sm:$0xff] %v2418
    %2591 = vst [vmem:[#allocation7 + $0x28] sm:$0xff] %v2419
    %2592 = vst [vmem:[#allocation7 + $0x30] sm:$0xff] %v2420
    %2593 = vst [vmem:[#allocation7 + $0x38] sm:$0xff] %v2421
    %2594 = vst [vmem:[#allocation7 + $0x40] sm:$0xff] %v2422
    %2595 = vst [vmem:[#allocation7 + $0x48] sm:$0xff] %v2423
    %2596 = vst [vmem:[#allocation7 + $0x50] sm:$0xff] %v2424
    %2597 = vst [vmem:[#allocation7 + $0x58] sm:$0xff] %v2425
    %2598 = vst [vmem:[#allocation7 + $0x60] sm:$0xff] %v2426
    %2599 = vst [vmem:[#allocation7 + $0x68] sm:$0xff] %v2427
    %2600 = vst [vmem:[#allocation7 + $0x70] sm:$0xff] %v2428
    %2601 = vst [vmem:[#allocation7 + $0x78] sm:$0xff] %v2429
    %2602 = vst [vmem:[#allocation7 + $0x80] sm:$0xff] %v2430
    %2603 = vst [vmem:[#allocation7 + $0x88] sm:$0xff] %v2431
    %2604 = vst [vmem:[#allocation7 + $0x90] sm:$0xff] %v2432
    %2605 = vst [vmem:[#allocation7 + $0x98] sm:$0xff] %v2433
    %2606 = vst [vmem:[#allocation7 + $0xa0] sm:$0xff] %v2434
    %2607 = vst [vmem:[#allocation7 + $0xa8] sm:$0xff] %v2435
    %2608 = vst [vmem:[#allocation7 + $0xb0] sm:$0xff] %v2436
    %2609 = vst [vmem:[#allocation7 + $0xb8] sm:$0xff] %v2437
    %2610 = vst [vmem:[#allocation7 + $0xc0] sm:$0xff] %v2438
    %2611 = vst [vmem:[#allocation7 + $0xc8] sm:$0xff] %v2439
    %2612 = vst [vmem:[#allocation7 + $0xd0] sm:$0xff] %v2440
    %2613 = vst [vmem:[#allocation7 + $0xd8] sm:$0xff] %v2441
    %2614 = vst [vmem:[#allocation7 + $0xe0] sm:$0xff] %v2442
    %2615 = vst [vmem:[#allocation7 + $0xe8] sm:$0xff] %v2443
    %2616 = vst [vmem:[#allocation7 + $0xf0] sm:$0xff] %v2444
    %2617 = vst [vmem:[#allocation7 + $0xf8] sm:$0xff] %v2445
    %2618 = vst [vmem:[#allocation7 + $0x100] sm:$0xff] %v2446
    %2619 = vst [vmem:[#allocation7 + $0x108] sm:$0xff] %v2447
    %2620 = vst [vmem:[#allocation7 + $0x110] sm:$0xff] %v2448
    %2621 = vst [vmem:[#allocation7 + $0x118] sm:$0xff] %v2449
    %2622 = vst [vmem:[#allocation7 + $0x120] sm:$0xff] %v2450
    %2623 = vst [vmem:[#allocation7 + $0x128] sm:$0xff] %v2451
    %2624 = vst [vmem:[#allocation7 + $0x130] sm:$0xff] %v2452
    %2625 = vst [vmem:[#allocation7 + $0x138] sm:$0xff] %v2453
    %2626 = vst [vmem:[#allocation7 + $0x140] sm:$0xff] %v2454
    %2627 = vst [vmem:[#allocation7 + $0x148] sm:$0xff] %v2455
    %2628 = vst [vmem:[#allocation7 + $0x150] sm:$0xff] %v2456
    %2629 = vst [vmem:[#allocation7 + $0x158] sm:$0xff] %v2457
    %2630 = vst [vmem:[#allocation7 + $0x160] sm:$0xff] %v2458
    %2631 = vst [vmem:[#allocation7 + $0x168] sm:$0xff] %v2459
    %2632 = vst [vmem:[#allocation7 + $0x170] sm:$0xff] %v2460
    %2633 = vst [vmem:[#allocation7 + $0x178] sm:$0xff] %v2461
    %2634 = vst [vmem:[#allocation7 + $0x180] sm:$0xff] %v2462
    %2635 = vst [vmem:[#allocation7 + $0x188] sm:$0xff] %v2463
    %2636 = vst [vmem:[#allocation7 + $0x190] sm:$0xff] %v2464
    %2637 = vst [vmem:[#allocation7 + $0x198] sm:$0xff] %v2465
    %2638 = vst [vmem:[#allocation7 + $0x1a0] sm:$0xff] %v2466
    %2639 = vst [vmem:[#allocation7 + $0x1a8] sm:$0xff] %v2467
    %2640 = vst [vmem:[#allocation7 + $0x1b0] sm:$0xff] %v2468
    %2641 = vst [vmem:[#allocation7 + $0x1b8] sm:$0xff] %v2469
    %2642 = vst [vmem:[#allocation7 + $0x1c0] sm:$0xff] %v2470
    %2643 = vst [vmem:[#allocation7 + $0x1c8] sm:$0xff] %v2471
    %2644 = vst [vmem:[#allocation7 + $0x1d0] sm:$0xff] %v2472
    %2645 = vst [vmem:[#allocation7 + $0x1d8] sm:$0xff] %v2473
    %2646 = vst [vmem:[#allocation7 + $0x1e0] sm:$0xff] %v2474
    %2647 = vst [vmem:[#allocation7 + $0x1e8] sm:$0xff] %v2475
    %2648 = vst [vmem:[#allocation7 + $0x1f0] sm:$0xff] %v2476
    %2649 = vst [vmem:[#allocation7 + $0x1f8] sm:$0xff] %v2477
    %2650 = vst [vmem:[#allocation7 + $0x200] sm:$0xff] %v2478
    %2651 = vst [vmem:[#allocation7 + $0x208] sm:$0xff] %v2479
    %2652 = vst [vmem:[#allocation7 + $0x210] sm:$0xff] %v2480
    %2653 = vst [vmem:[#allocation7 + $0x218] sm:$0xff] %v2481
    %2654 = vst [vmem:[#allocation7 + $0x220] sm:$0xff] %v2482
    %2655 = vst [vmem:[#allocation7 + $0x228] sm:$0xff] %v2483
    %2656 = vst [vmem:[#allocation7 + $0x230] sm:$0xff] %v2484
    %2657 = vst [vmem:[#allocation7 + $0x238] sm:$0xff] %v2485
    %2658 = vst [vmem:[#allocation7 + $0x240] sm:$0xff] %v2486
    %2659 = vst [vmem:[#allocation7 + $0x248] sm:$0xff] %v2487
    %2660 = vst [vmem:[#allocation7 + $0x250] sm:$0xff] %v2488
    %2661 = vst [vmem:[#allocation7 + $0x258] sm:$0xff] %v2489
    %2662 = vst [vmem:[#allocation7 + $0x260] sm:$0xff] %v2490
    %2663 = vst [vmem:[#allocation7 + $0x268] sm:$0xff] %v2491
    %2664 = vst [vmem:[#allocation7 + $0x270] sm:$0xff] %v2492
    %2665 = vst [vmem:[#allocation7 + $0x278] sm:$0xff] %v2493
    %2666 = vst [vmem:[#allocation7 + $0x280] sm:$0xff] %v2494
    %2667 = vst [vmem:[#allocation7 + $0x288] sm:$0xff] %v2495
    %2668 = vst [vmem:[#allocation7 + $0x290] sm:$0xff] %v2496
    %2669 = vst [vmem:[#allocation7 + $0x298] sm:$0xff] %v2497
    %2670 = vst [vmem:[#allocation7 + $0x2a0] sm:$0xff] %v2498
    %2671 = vst [vmem:[#allocation7 + $0x2a8] sm:$0xff] %v2499
    %2672 = vst [vmem:[#allocation7 + $0x2b0] sm:$0xff] %v2500
    %2673 = vst [vmem:[#allocation7 + $0x2b8] sm:$0xff] %v2501
    %2674 = vst [vmem:[#allocation7 + $0x2c0] sm:$0xff] %v2502
    %2675 = vst [vmem:[#allocation7 + $0x2c8] sm:$0xff] %v2503
    %2676 = vst [vmem:[#allocation7 + $0x2d0] sm:$0xff] %v2504
    %2677 = vst [vmem:[#allocation7 + $0x2d8] sm:$0xff] %v2505
    %2678 = vst [vmem:[#allocation7 + $0x2e0] sm:$0xff] %v2506
    %2679 = vst [vmem:[#allocation7 + $0x2e8] sm:$0xff] %v2507
    %2680 = vst [vmem:[#allocation7 + $0x2f0] sm:$0xff] %v2508
    %2681 = vst [vmem:[#allocation7 + $0x2f8] sm:$0xff] %v2509
    %2682 = vst [vmem:[#allocation7 + $0x300] sm:$0xff] %v2510
    %2683 = vst [vmem:[#allocation7 + $0x308] sm:$0xff] %v2511
    %2684 = vst [vmem:[#allocation7 + $0x310] sm:$0xff] %v2512
    %2685 = vst [vmem:[#allocation7 + $0x318] sm:$0xff] %v2513
    %2686 = vst [vmem:[#allocation7 + $0x320] sm:$0xff] %v2514
    %2687 = vst [vmem:[#allocation7 + $0x328] sm:$0xff] %v2515
    %2688 = vst [vmem:[#allocation7 + $0x330] sm:$0xff] %v2516
    %2689 = vst [vmem:[#allocation7 + $0x338] sm:$0xff] %v2517
    %2690 = vst [vmem:[#allocation7 + $0x340] sm:$0xff] %v2518
    %2691 = vst [vmem:[#allocation7 + $0x348] sm:$0xff] %v2519
    %2692 = vst [vmem:[#allocation7 + $0x350] sm:$0xff] %v2520
    %2693 = vst [vmem:[#allocation7 + $0x358] sm:$0xff] %v2521
    %2694 = vst [vmem:[#allocation7 + $0x360] sm:$0xff] %v2522
    %2695 = vst [vmem:[#allocation7 + $0x368] sm:$0xff] %v2523
    %2696 = vst [vmem:[#allocation7 + $0x370] sm:$0xff] %v2524
    %2697 = vst [vmem:[#allocation7 + $0x378] sm:$0xff] %v2525
    %2698 = vst [vmem:[#allocation7 + $0x380] sm:$0xff] %v2526
    %2699 = vst [vmem:[#allocation7 + $0x388] sm:$0xff] %v2527
    %2700 = vst [vmem:[#allocation7 + $0x390] sm:$0xff] %v2528
    %2701 = vst [vmem:[#allocation7 + $0x398] sm:$0xff] %v2529
    %2702 = vst [vmem:[#allocation7 + $0x3a0] sm:$0xff] %v2530
    %2703 = vst [vmem:[#allocation7 + $0x3a8] sm:$0xff] %v2531
    %2704 = vst [vmem:[#allocation7 + $0x3b0] sm:$0xff] %v2532
    %2705 = vst [vmem:[#allocation7 + $0x3b8] sm:$0xff] %v2533
    %2706 = vst [vmem:[#allocation7 + $0x3c0] sm:$0xff] %v2534
    %2707 = vst [vmem:[#allocation7 + $0x3c8] sm:$0xff] %v2535
    %2708 = vst [vmem:[#allocation7 + $0x3d0] sm:$0xff] %v2536
    %2709 = vst [vmem:[#allocation7 + $0x3d8] sm:$0xff] %v2537
    %2710 = vst [vmem:[#allocation7 + $0x3e0] sm:$0xff] %v2538
    %2711 = vst [vmem:[#allocation7 + $0x3e8] sm:$0xff] %v2539
    %2712 = vst [vmem:[#allocation7 + $0x3f0] sm:$0xff] %v2540
    %2713 = vst [vmem:[#allocation7 + $0x3f8] sm:$0xff] %v2541
    %2714 = vst [vmem:[#allocation7 + $0x400] sm:$0xff] %v2542
    %2715 = vst [vmem:[#allocation7 + $0x408] sm:$0xff] %v2543
    %2716 = vst [vmem:[#allocation7 + $0x410] sm:$0xff] %v2544
    %2717 = vst [vmem:[#allocation7 + $0x418] sm:$0xff] %v2545
    %2718 = vst [vmem:[#allocation7 + $0x420] sm:$0xff] %v2546
    %2719 = vst [vmem:[#allocation7 + $0x428] sm:$0xff] %v2547
    %2720 = vst [vmem:[#allocation7 + $0x430] sm:$0xff] %v2548
    %2721 = vst [vmem:[#allocation7 + $0x438] sm:$0xff] %v2549
    %2722 = vst [vmem:[#allocation7 + $0x440] sm:$0xff] %v2550
    %2723 = vst [vmem:[#allocation7 + $0x448] sm:$0xff] %v2551
    %2724 = vst [vmem:[#allocation7 + $0x450] sm:$0xff] %v2552
    %2725 = vst [vmem:[#allocation7 + $0x458] sm:$0xff] %v2553
    %2726 = vst [vmem:[#allocation7 + $0x460] sm:$0xff] %v2554
    %2727 = vst [vmem:[#allocation7 + $0x468] sm:$0xff] %v2555
    %2728 = vst [vmem:[#allocation7 + $0x470] sm:$0xff] %v2556
    %2729 = vst [vmem:[#allocation7 + $0x478] sm:$0xff] %v2557
    %2730 = vst [vmem:[#allocation7 + $0x480] sm:$0xff] %v2558
    %2731 = vst [vmem:[#allocation7 + $0x488] sm:$0xff] %v2559
    %2732 = vst [vmem:[#allocation7 + $0x490] sm:$0xff] %v2560
    %2733 = vst [vmem:[#allocation7 + $0x498] sm:$0xff] %v2561
    %2734 = vst [vmem:[#allocation7 + $0x4a0] sm:$0xff] %v2562
    %2735 = vst [vmem:[#allocation7 + $0x4a8] sm:$0xff] %v2563
    %2736 = vst [vmem:[#allocation7 + $0x4b0] sm:$0xff] %v2564
    %2737 = vst [vmem:[#allocation7 + $0x4b8] sm:$0xff] %v2565
    %2738 = vst [vmem:[#allocation7 + $0x4c0] sm:$0xff] %v2566
    %2739 = vst [vmem:[#allocation7 + $0x4c8] sm:$0xff] %v2567
    %2740 = vst [vmem:[#allocation7 + $0x4d0] sm:$0xff] %v2568
    %2741 = vst [vmem:[#allocation7 + $0x4d8] sm:$0xff] %v2569
    %2742 = vst [vmem:[#allocation7 + $0x4e0] sm:$0xff] %v2570
    %2743 = vst [vmem:[#allocation7 + $0x4e8] sm:$0xff] %v2571
    %2744 = vst [vmem:[#allocation7 + $0x4f0] sm:$0xff] %v2572
    %2745 = vst [vmem:[#allocation7 + $0x4f8] sm:$0xff] %v2573
    %2746 = vst [vmem:[#allocation7 + $0x500] sm:$0xff] %v2574
    %2747 = vst [vmem:[#allocation7 + $0x508] sm:$0xff] %v2575
    %2748 = vst [vmem:[#allocation7 + $0x510] sm:$0xff] %v2576
    %2749 = vst [vmem:[#allocation7 + $0x518] sm:$0xff] %v2577
    %2750 = vst [vmem:[#allocation7 + $0x520] sm:$0xff] %v2578
    %2751 = vst [vmem:[#allocation7 + $0x528] sm:$0xff] %v2579
    %2752 = vst [vmem:[#allocation7 + $0x530] sm:$0xff] %v2580
    %2753 = vst [vmem:[#allocation7 + $0x538] sm:$0xff] %v2581
    %2754 = vst [vmem:[#allocation7 + $0x540] sm:$0xff] %v2582
    %2755 = vst [vmem:[#allocation7 + $0x548] sm:$0xff] %v2583
    %2756 = vst [vmem:[#allocation7 + $0x550] sm:$0xff] %v2584
    %2757 = vst [vmem:[#allocation7 + $0x558] sm:$0xff] %v2585
    // Predicated region
    $region26: #{tpu_custom_call.1} parent=1 // pred_check
      _
    $region27: #{tpu_custom_call.1} parent=1 // pred_check_branch
      %2759 = sbr.rel (0) target = $region29
    $region28: #{tpu_custom_call.1} parent=1 // pred_region
      %s2761 = ssub.s32 22016, 22016
      %2762 = vsyncadd [#allocation4], %s2761
      %s2763 = sshll.u32 [#allocation7], 4
      %s2764 = int_to_ptr.vmem [resolvable:$true] %s2763
      %2769 = dma.vmem_to_hbm [thread:$0]  %s2764, 22016, %s4, [#allocation4], 128, 128, 8
    $region29: #{tpu_custom_call.1} parent=1 // pred_fallthru
      _
    // Predicated region
    $region30: #{tpu_custom_call.1} parent=1 // pred_check
      _
    $region31: #{tpu_custom_call.1} parent=1 // pred_check_branch
      %2771 = sbr.rel (0) target = $region33
    $region32: #{tpu_custom_call.1} parent=1 // pred_region
      %2772 = dma.done [#allocation4], 22016
    $region33: #{tpu_custom_call.1} parent=1 // pred_fallthru
      _
    %2773 = vsyncpa [#allocation3], 1
    %2774 = vsyncpa [#allocation6], 1
    %2775 = vsyncpa [#allocation4], 1

</llo_original>
